<compile_context>
chip_gen: v6e
topology: v6e:2x2x1
jax: 0.10.0
libtpu: 0.0.40
codegen_flags: <defaults>
</compile_context>

<pallas_src>
import jax
import jax.numpy as jnp
from jax.experimental import pallas as pl
from jax.experimental.pallas import tpu as pltpu


def _synapse_kernel(x_ref, w_ref, b_ref, gate_ref, o_ref):
    tb, dim, _ = x_ref.shape
    # Collapse leading dims only; lane (last) dim untouched -> layout-preserving.
    h = x_ref[...].reshape(tb * dim, dim).astype(jnp.bfloat16)
    for i in range(3):  # static unroll over the 3 ion channels
        acc = jnp.dot(h, w_ref[i], preferred_element_type=jnp.float32)
        acc = acc + b_ref[i:i + 1, :]          # (1, dim) broadcast over rows
        t = jnp.tanh(acc)                      # f32 tanh (EUP)
        h = t.astype(jnp.bfloat16) if i < 2 else t
    # Gate (dim, dim) broadcast over the batch tile; keep multiply in f32.
    out = h.reshape(tb, dim, dim) * gate_ref[...]
    o_ref[...] = out.astype(o_ref.dtype)


def _pick_tb(B, dim, vmem_budget_bytes=8 << 20, tb_max=64):
    # Per-step VMEM for the pipelined (double-buffered) x and out tiles.
    per_batch_bytes = 2 * 2 * dim * dim * 4  # 2 arrays * 2 buffers * f32 tile
    cap = max(1, vmem_budget_bytes // per_batch_bytes)
    cap = min(cap, tb_max, B)
    # Largest divisor of B <= cap that still leaves >= 2 grid steps (megacore).
    for t in range(cap, 0, -1):
        if B % t == 0 and B // t >= 2:
            return t
    for t in range(cap, 0, -1):
        if B % t == 0:
            return t
    return 1


def biological_synapse(x, params, tb=None):
    """x: (B, dim, dim) float32.
    params: w1..w3 (in, out) f32, b1..b3 (1, dim) f32, nt (dim, dim) f32."""
    B, d1, d2 = x.shape
    assert d1 == d2, "gate broadcast requires trailing dims (dim, dim)"
    dim = d2
    TB = _pick_tb(B, dim) if tb is None else tb
    assert B % TB == 0

    # Stack & cast weights to bf16 (f32 accumulation in-kernel), biases to (3, dim),
    # and hoist the sigmoid gate out of the grid loop.
    w_stack = jnp.stack([params["w1"], params["w2"], params["w3"]]).astype(jnp.bfloat16)
    b_stack = jnp.concatenate([params["b1"], params["b2"], params["b3"]], axis=0)  # (3, dim) f32
    gate = jax.nn.sigmoid(params["nt"].astype(jnp.float32))                        # (dim, dim) f32

    return pl.pallas_call(
        _synapse_kernel,
        out_shape=jax.ShapeDtypeStruct((B, dim, dim), jnp.float32),
        grid_spec=pltpu.PrefetchScalarGridSpec(
            num_scalar_prefetch=0,
            grid=(B // TB,),
            in_specs=[
                pl.BlockSpec((TB, dim, dim), lambda b: (b, 0, 0)),   # x
                pl.BlockSpec((3, dim, dim), lambda b: (0, 0, 0)),    # stacked weights (bf16)
                pl.BlockSpec((3, dim), lambda b: (0, 0)),            # stacked biases (f32)
                pl.BlockSpec((dim, dim), lambda b: (0, 0)),          # precomputed gate
            ],
            out_specs=pl.BlockSpec((TB, dim, dim), lambda b: (b, 0, 0)),
        ),
        compiler_params=pltpu.CompilerParams(
            dimension_semantics=("parallel",),
            vmem_limit_bytes=64 << 20,
        ),
    )(x, w_stack, b_stack, gate)


def init_params(key, dim):
    """Deterministic synthetic init mirroring the PyTorch module's shapes."""
    ks = jax.random.split(key, 7)
    bound = 1.0 / jnp.sqrt(dim)

    # nn.Linear weight is (out, in); store pre-transposed (in, out) for h @ W.
    def lin_w(k):
        return jax.random.uniform(k, (dim, dim), jnp.float32, -bound, bound)

    def lin_b(k):
        return jax.random.uniform(k, (1, dim), jnp.float32, -bound, bound)

    return {
        "w1": lin_w(ks[0]), "b1": lin_b(ks[1]),
        "w2": lin_w(ks[2]), "b2": lin_b(ks[3]),
        "w3": lin_w(ks[4]), "b3": lin_b(ks[5]),
        "nt": jax.random.normal(ks[6], (dim, dim), jnp.float32),  # torch.randn(dim, dim)
    }


def reference_bf16(x, p):
    """Same math as the kernel: bf16 matmul operands, f32 accumulation."""
    h = x
    for w, b in ((p["w1"], p["b1"]), (p["w2"], p["b2"]), (p["w3"], p["b3"])):
        h = jnp.tanh(
            jnp.dot(h.astype(jnp.bfloat16), w.astype(jnp.bfloat16),
                    preferred_element_type=jnp.float32) + b)
    return h * jax.nn.sigmoid(p["nt"])


def reference_f32(x, p):
    h = x
    for w, b in ((p["w1"], p["b1"]), (p["w2"], p["b2"]), (p["w3"], p["b3"])):
        h = jnp.tanh(h @ w + b)
    return h * jax.nn.sigmoid(p["nt"])


if __name__ == "__main__":
    B, dim = 8, 128
    key = jax.random.PRNGKey(0)
    kx, kp = jax.random.split(key)
    x = jax.random.normal(kx, (B, dim, dim), jnp.float32)
    params = init_params(kp, dim)

    out = biological_synapse(x, params)
    out = jax.block_until_ready(out)
    assert out.shape == (B, dim, dim)

    # Tight check vs. a reference using the same bf16-operand / f32-accum path.
    ref_bf16 = reference_bf16(x, params)
    assert jnp.allclose(out, ref_bf16, atol=1e-2, rtol=1e-2)

    # Loose check vs. the full-f32 PyTorch-equivalent forward.
    ref_f32 = reference_f32(x, params)
    assert jnp.allclose(out, ref_f32, atol=6e-2, rtol=6e-2)

    print("KERNEL_OK")
</pallas_src>

<mosaic_0001>
module attributes {stable_mosaic.version = 11 : i64} {
  func.func @_synapse_kernel(%arg0: i32, %arg1: memref<4x128x128xf32, #tpu.memory_space<vmem>>, %arg2: memref<3x128x128xbf16, #tpu.memory_space<vmem>>, %arg3: memref<3x128xf32, #tpu.memory_space<vmem>>, %arg4: memref<128x128xf32, #tpu.memory_space<vmem>>, %arg5: memref<4x128x128xf32, #tpu.memory_space<vmem>>) attributes {dimension_semantics = [#tpu.dimension_semantics<parallel>], iteration_bounds = array<i64: 2>, scalar_prefetch = 0 : i64, scratch_operands = 0 : i64, tpu.core_type = #tpu.core_type<tc>, window_params = [{transform_indices = @transform_0, window_bounds = array<i64: 4, 128, 128>}, {pipeline_mode = #tpu.pipeline_mode<synchronous>, transform_indices = @transform_1, window_bounds = array<i64: 3, 128, 128>}, {pipeline_mode = #tpu.pipeline_mode<synchronous>, transform_indices = @transform_2, window_bounds = array<i64: 3, 128>}, {pipeline_mode = #tpu.pipeline_mode<synchronous>, transform_indices = @transform_3, window_bounds = array<i64: 128, 128>}, {transform_indices = @transform_4, window_bounds = array<i64: 4, 128, 128>}]} {
    %c0 = arith.constant 0 : index
    %c0_0 = arith.constant 0 : index
    %c0_1 = arith.constant 0 : index
    %0 = vector.load %arg1[%c0, %c0_0, %c0_1] : memref<4x128x128xf32, #tpu.memory_space<vmem>>, vector<4x128x128xf32>
    %1 = vector.shape_cast %0 : vector<4x128x128xf32> to vector<512x128xf32>
    %2 = arith.truncf %1 : vector<512x128xf32> to vector<512x128xbf16>
    %c0_2 = arith.constant 0 : index
    %c0_3 = arith.constant 0 : index
    %c0_4 = arith.constant 0 : index
    %3 = vector.load %arg2[%c0_2, %c0_3, %c0_4] : memref<3x128x128xbf16, #tpu.memory_space<vmem>>, vector<1x128x128xbf16>
    %4 = vector.shape_cast %3 : vector<1x128x128xbf16> to vector<128x128xbf16>
    %cst = arith.constant dense<0.000000e+00> : vector<512x128xf32>
    %5 = tpu.matmul %2, %4, %cst {dimension_numbers = #tpu.dot_dimension_numbers<[1], [0], [0], [1], [0, 0, 1, 1], [], []>} : vector<512x128xbf16>, vector<128x128xbf16>, vector<512x128xf32> -> vector<512x128xf32>
    %c0_5 = arith.constant 0 : index
    %c0_6 = arith.constant 0 : index
    %6 = vector.load %arg3[%c0_5, %c0_6] : memref<3x128xf32, #tpu.memory_space<vmem>>, vector<1x128xf32>
    %7 = vector.broadcast %6 : vector<1x128xf32> to vector<512x128xf32>
    %8 = arith.addf %5, %7 : vector<512x128xf32>
    %9 = math.tanh %8 : vector<512x128xf32>
    %10 = arith.truncf %9 : vector<512x128xf32> to vector<512x128xbf16>
    %c1 = arith.constant 1 : index
    %c0_7 = arith.constant 0 : index
    %c0_8 = arith.constant 0 : index
    %11 = vector.load %arg2[%c1, %c0_7, %c0_8] : memref<3x128x128xbf16, #tpu.memory_space<vmem>>, vector<1x128x128xbf16>
    %12 = vector.shape_cast %11 : vector<1x128x128xbf16> to vector<128x128xbf16>
    %cst_9 = arith.constant dense<0.000000e+00> : vector<512x128xf32>
    %13 = tpu.matmul %10, %12, %cst_9 {dimension_numbers = #tpu.dot_dimension_numbers<[1], [0], [0], [1], [0, 0, 1, 1], [], []>} : vector<512x128xbf16>, vector<128x128xbf16>, vector<512x128xf32> -> vector<512x128xf32>
    %c1_10 = arith.constant 1 : index
    %c0_11 = arith.constant 0 : index
    %14 = vector.load %arg3[%c1_10, %c0_11] : memref<3x128xf32, #tpu.memory_space<vmem>>, vector<1x128xf32>
    %15 = vector.broadcast %14 : vector<1x128xf32> to vector<512x128xf32>
    %16 = arith.addf %13, %15 : vector<512x128xf32>
    %17 = math.tanh %16 : vector<512x128xf32>
    %18 = arith.truncf %17 : vector<512x128xf32> to vector<512x128xbf16>
    %c2 = arith.constant 2 : index
    %c0_12 = arith.constant 0 : index
    %c0_13 = arith.constant 0 : index
    %19 = vector.load %arg2[%c2, %c0_12, %c0_13] : memref<3x128x128xbf16, #tpu.memory_space<vmem>>, vector<1x128x128xbf16>
    %20 = vector.shape_cast %19 : vector<1x128x128xbf16> to vector<128x128xbf16>
    %cst_14 = arith.constant dense<0.000000e+00> : vector<512x128xf32>
    %21 = tpu.matmul %18, %20, %cst_14 {dimension_numbers = #tpu.dot_dimension_numbers<[1], [0], [0], [1], [0, 0, 1, 1], [], []>} : vector<512x128xbf16>, vector<128x128xbf16>, vector<512x128xf32> -> vector<512x128xf32>
    %c2_15 = arith.constant 2 : index
    %c0_16 = arith.constant 0 : index
    %22 = vector.load %arg3[%c2_15, %c0_16] : memref<3x128xf32, #tpu.memory_space<vmem>>, vector<1x128xf32>
    %23 = vector.broadcast %22 : vector<1x128xf32> to vector<512x128xf32>
    %24 = arith.addf %21, %23 : vector<512x128xf32>
    %25 = math.tanh %24 : vector<512x128xf32>
    %26 = vector.shape_cast %25 : vector<512x128xf32> to vector<4x128x128xf32>
    %c0_17 = arith.constant 0 : index
    %c0_18 = arith.constant 0 : index
    %27 = vector.load %arg4[%c0_17, %c0_18] : memref<128x128xf32, #tpu.memory_space<vmem>>, vector<128x128xf32>
    %28 = vector.shape_cast %27 : vector<128x128xf32> to vector<1x128x128xf32>
    %29 = vector.broadcast %28 : vector<1x128x128xf32> to vector<4x128x128xf32>
    %30 = arith.mulf %26, %29 : vector<4x128x128xf32>
    %c0_19 = arith.constant 0 : index
    %c0_20 = arith.constant 0 : index
    %c0_21 = arith.constant 0 : index
    %31 = vector.load %arg5[%c0_19, %c0_20, %c0_21] : memref<4x128x128xf32, #tpu.memory_space<vmem>>, vector<4x128x128xf32>
    tpu.vector_store %arg5[%c0_19, %c0_20, %c0_21], %30 {strides = array<i32>} : memref<4x128x128xf32, #tpu.memory_space<vmem>>, vector<4x128x128xf32>,
    return
  }
  func.func @transform_0(%arg0: i32) -> (i32, i32, i32) {
    %c0_i32 = arith.constant 0 : i32
    %c0_i32_0 = arith.constant 0 : i32
    %c0_i32_1 = arith.constant 0 : i32
    return %arg0, %c0_i32, %c0_i32_0 : i32, i32, i32
  }
  func.func @transform_1(%arg0: i32) -> (i32, i32, i32) {
    %c0_i32 = arith.constant 0 : i32
    %c0_i32_0 = arith.constant 0 : i32
    %c0_i32_1 = arith.constant 0 : i32
    %c0_i32_2 = arith.constant 0 : i32
    return %c0_i32, %c0_i32_0, %c0_i32_1 : i32, i32, i32
  }
  func.func @transform_2(%arg0: i32) -> (i32, i32) {
    %c0_i32 = arith.constant 0 : i32
    %c0_i32_0 = arith.constant 0 : i32
    %c0_i32_1 = arith.constant 0 : i32
    return %c0_i32, %c0_i32_0 : i32, i32
  }
  func.func @transform_3(%arg0: i32) -> (i32, i32) {
    %c0_i32 = arith.constant 0 : i32
    %c0_i32_0 = arith.constant 0 : i32
    %c0_i32_1 = arith.constant 0 : i32
    return %c0_i32, %c0_i32_0 : i32, i32
  }
  func.func @transform_4(%arg0: i32) -> (i32, i32, i32) {
    %c0_i32 = arith.constant 0 : i32
    %c0_i32_0 = arith.constant 0 : i32
    %c0_i32_1 = arith.constant 0 : i32
    return %arg0, %c0_i32, %c0_i32_0 : i32, i32, i32
  }
}

</mosaic_0001>

<llo_original>
// kernel: tpu_custom_call.1
$region0: #{tpu_custom_call.1}
  #allocation0 [shape = 'u32[]', space=smem, size = 0x4, offset = 0x4, fixed_abs, tag = 'smem constant byte address 0x4 - core index']
  #allocation1 [shape = 'u32[144,128]{1,0:T(1,128)}', space=vmem, size = 0x12000, scoped, tag = 'internal scratch']
  %s0 = inlined_call_operand.hbm [shape: f32[8,128,128], index: 0, kind: input, shape index: {}]
  %s1 = inlined_call_operand.hbm [shape: bf16[3,128,128], index: 1, kind: input, shape index: {}]
  %s2 = inlined_call_operand.hbm [shape: f32[3,128], index: 2, kind: input, shape index: {}]
  %s3 = inlined_call_operand.hbm [shape: f32[128,128], index: 3, kind: input, shape index: {}]
  %s4 = inlined_call_operand.hbm [shape: f32[8,128,128], index: 4, kind: output, shape index: {}]
  %s5 = sld [smem:[#allocation0]]
  $region65: #{tpu_custom_call.1} parent=0
    _
  %s7 = ssub.s32 1, %s5
  %s8 = scalar_select 0, %s7, %s5
  $region1: #{tpu_custom_call.1} parent=0
    #allocation2 [shape = 'u8[524288]{0}', space=vmem, size = 0x80000, scoped, tag = 'input window, operand 0']
    #allocation3 [shape = 's32[2]{0}', space=sflag, size = 0x8, scoped, tag = 'scoped memory for tpu_custom_call.1']
    #allocation4 [shape = 's32[2]{0}', space=sflag, size = 0x8, scoped, tag = 'scoped memory for tpu_custom_call.1']
    #allocation5 [shape = 'u8[98304]{0}', space=vmem, size = 0x18000, scoped, tag = 'input window, operand 1, single buffered']
    #allocation6 [shape = 's32[1]{0}', space=sflag, size = 0x4, scoped, tag = 'scoped memory for tpu_custom_call.1']
    #allocation7 [shape = 'u8[2048]{0}', space=vmem, size = 0x800, scoped, tag = 'input window, operand 2, single buffered']
    #allocation8 [shape = 'u8[65536]{0}', space=vmem, size = 0x10000, scoped, tag = 'input window, operand 3, single buffered']
    #allocation9 [shape = 's32[1]{0}', space=sflag, size = 0x4, scoped, tag = 'scoped memory for tpu_custom_call.1']
    #allocation10 [shape = 'u8[524288]{0}', space=vmem, size = 0x80000, scoped, tag = 'output window, operand 0']
    %9 = vsyncpa [#allocation3], 0
    %s10 = scalar_lea.sflag [#allocation3], 1
    %11 = vsyncpa %s10, 0
    %12 = vsyncpa [#allocation6], 0
    %13 = vsyncpa [#allocation9], 0
    %14 = vsyncpa [#allocation4], 0
    %s15 = scalar_lea.sflag [#allocation4], 1
    %16 = vsyncpa %s15, 0
    loop: start=0, step=1, limit=4
    $region2: #{tpu_custom_call.1} parent=1 // loop_pre_header
      _
    $region3: #{tpu_custom_call.1} parent=1 // loop_header
      %s18 = sphi 0, %s22
      %p19 = scmp.ge.s32.totalorder %s18, 4
      %s28 = sphi 0, %s30
      %s31 = sphi 0, %s28
      %s32 = sphi 0, %s31
      %s48 = sphi 0, %s32
      %s52 = sphi 0, %s52
      %s54 = sphi 0, %s52
      %s55 = sphi 0, %s54
      %s69 = sphi 0, %s55
      %s73 = sphi 0, %s73
      %s75 = sphi 0, %s73
      %s76 = sphi 0, %s75
      %s90 = sphi 0, %s76
      %s94 = sphi 0, %s94
      %s96 = sphi 0, %s94
      %s97 = sphi 0, %s96
      %s111 = sphi 0, %s97
      %s117 = sphi 0, %s119
      %s120 = sphi 0, %s117
      %s121 = sphi 0, %s120
      %s137 = sphi 0, %s121
    $region4: #{tpu_custom_call.1} parent=1 // loop_header_branch
      %21 = sbr.rel (%p19) target = $region8
    $region5: #{tpu_custom_call.1} parent=1 // loop_body
      %s23 = ssub.s32 %s18, 1
      %s24 = ssub.s32 %s18, 2
      %s25 = sadd.s32 %s18, 1
      %s26 = ssub.s32 %s18, %s25
      %p27 = scmp.eq.s32.totalorder %s26, 0
      %s29 = sadd.s32 %s28, 1
      %s30 = scalar_select %p27, %s28, %s29
      %p33 = pneg %p27
      %p34 = scmp.eq.s32.totalorder %s18, 1
      %p35 = por %p33, %p34
      %p36 = scmp.ne.s32.totalorder %s28, %s31
      %p37 = scmp.eq.s32.totalorder %s18, 0
      %p38 = por %p36, %p37
      %p39 = scmp.ne.s32.totalorder %s28, %s31
      %p40 = scmp.eq.s32.totalorder %s23, 1
      %p41 = por %p39, %p40
      %p42 = scmp.ne.s32.totalorder %s31, %s32
      %p43 = scmp.eq.s32.totalorder %s23, 0
      %p44 = por %p42, %p43
      %p45 = scmp.ne.s32.totalorder %s31, %s32
      %p46 = scmp.eq.s32.totalorder %s24, 1
      %p47 = por %p45, %p46
      %p49 = scmp.ne.s32.totalorder %s32, %s48
      %p50 = scmp.eq.s32.totalorder %s24, 0
      %p51 = por %p49, %p50
      %s53 = sadd.s32 %s52, 1
      %p56 = scmp.eq.s32.totalorder %s18, 1
      %p57 = scmp.ne.s32.totalorder %s52, %s54
      %p58 = scmp.eq.s32.totalorder %s18, 0
      %p59 = por %p57, %p58
      %p60 = scmp.ne.s32.totalorder %s52, %s54
      %p61 = scmp.eq.s32.totalorder %s23, 1
      %p62 = por %p60, %p61
      %p63 = scmp.ne.s32.totalorder %s54, %s55
      %p64 = scmp.eq.s32.totalorder %s23, 0
      %p65 = por %p63, %p64
      %p66 = scmp.ne.s32.totalorder %s54, %s55
      %p67 = scmp.eq.s32.totalorder %s24, 1
      %p68 = por %p66, %p67
      %p70 = scmp.ne.s32.totalorder %s55, %s69
      %p71 = scmp.eq.s32.totalorder %s24, 0
      %p72 = por %p70, %p71
      %s74 = sadd.s32 %s73, 1
      %p77 = scmp.eq.s32.totalorder %s18, 1
      %p78 = scmp.ne.s32.totalorder %s73, %s75
      %p79 = scmp.eq.s32.totalorder %s18, 0
      %p80 = por %p78, %p79
      %p81 = scmp.ne.s32.totalorder %s73, %s75
      %p82 = scmp.eq.s32.totalorder %s23, 1
      %p83 = por %p81, %p82
      %p84 = scmp.ne.s32.totalorder %s75, %s76
      %p85 = scmp.eq.s32.totalorder %s23, 0
      %p86 = por %p84, %p85
      %p87 = scmp.ne.s32.totalorder %s75, %s76
      %p88 = scmp.eq.s32.totalorder %s24, 1
      %p89 = por %p87, %p88
      %p91 = scmp.ne.s32.totalorder %s76, %s90
      %p92 = scmp.eq.s32.totalorder %s24, 0
      %p93 = por %p91, %p92
      %s95 = sadd.s32 %s94, 1
      %p98 = scmp.eq.s32.totalorder %s18, 1
      %p99 = scmp.ne.s32.totalorder %s94, %s96
      %p100 = scmp.eq.s32.totalorder %s18, 0
      %p101 = por %p99, %p100
      %p102 = scmp.ne.s32.totalorder %s94, %s96
      %p103 = scmp.eq.s32.totalorder %s23, 1
      %p104 = por %p102, %p103
      %p105 = scmp.ne.s32.totalorder %s96, %s97
      %p106 = scmp.eq.s32.totalorder %s23, 0
      %p107 = por %p105, %p106
      %p108 = scmp.ne.s32.totalorder %s96, %s97
      %p109 = scmp.eq.s32.totalorder %s24, 1
      %p110 = por %p108, %p109
      %p112 = scmp.ne.s32.totalorder %s97, %s111
      %p113 = scmp.eq.s32.totalorder %s24, 0
      %p114 = por %p112, %p113
      %s115 = ssub.s32 %s18, %s25
      %p116 = scmp.eq.s32.totalorder %s115, 0
      %s118 = sadd.s32 %s117, 1
      %s119 = scalar_select %p116, %s117, %s118
      %p122 = pneg %p116
      %p123 = scmp.eq.s32.totalorder %s18, 1
      %p124 = por %p122, %p123
      %p125 = scmp.ne.s32.totalorder %s117, %s120
      %p126 = scmp.eq.s32.totalorder %s18, 0
      %p127 = por %p125, %p126
      %p128 = scmp.ne.s32.totalorder %s117, %s120
      %p129 = scmp.eq.s32.totalorder %s23, 1
      %p130 = por %p128, %p129
      %p131 = scmp.ne.s32.totalorder %s120, %s121
      %p132 = scmp.eq.s32.totalorder %s23, 0
      %p133 = por %p131, %p132
      %p134 = scmp.ne.s32.totalorder %s120, %s121
      %p135 = scmp.eq.s32.totalorder %s24, 1
      %p136 = por %p134, %p135
      %p138 = scmp.ne.s32.totalorder %s121, %s137
      %p139 = scmp.eq.s32.totalorder %s24, 0
      %p140 = por %p138, %p139
      %p141 = scmp.le.s32.totalorder 1, %s18
      %p142 = scmp.lt.s32.totalorder %s18, 3
      %p143 = pnand %p141, %p142
      %p144 = pneg %p143
      // Predicated region
      $region9: #{tpu_custom_call.1} parent=5 // pred_check
        _
      $region10: #{tpu_custom_call.1} parent=5 // pred_check_branch
        %146 = sbr.rel (%p143) target = $region12
      $region11: #{tpu_custom_call.1} parent=5 // pred_region
        %s147 = ssub.s32 %s18, 1
        // Predicated region
        $region13: #{tpu_custom_call.1} parent=11 // pred_check
          %p148 = pneg %p65
        $region14: #{tpu_custom_call.1} parent=11 // pred_check_branch
          %150 = sbr.rel (%p148) target = $region16
        $region15: #{tpu_custom_call.1} parent=11 // pred_region
          %s152 = ssub.s32 3072, 3072
          %153 = vsyncadd [#allocation6], %s152
          %s154 = sshll.u32 [#allocation5], 4
          %s155 = int_to_ptr.vmem [resolvable:$true] %s154
          %160 = dma.hbm_to_vmem [thread:$0]  %s1, 3072, %s155, [#allocation6], 64, 64, 4
        $region16: #{tpu_custom_call.1} parent=11 // pred_fallthru
          _
        // Predicated region
        $region17: #{tpu_custom_call.1} parent=11 // pred_check
          %p161 = pneg %p86
        $region18: #{tpu_custom_call.1} parent=11 // pred_check_branch
          %163 = sbr.rel (%p161) target = $region20
        $region19: #{tpu_custom_call.1} parent=11 // pred_region
          %s165 = ssub.s32 64, 64
          %166 = vsyncadd [#allocation6], %s165
          %s168 = sshll.u32 [#allocation7], 4
          %s169 = int_to_ptr.vmem [resolvable:$true] %s168
          %171 = dma.hbm_to_vmem [thread:$0]  %s2, 64, %s169, [#allocation6]
        $region20: #{tpu_custom_call.1} parent=11 // pred_fallthru
          _
        // Predicated region
        $region21: #{tpu_custom_call.1} parent=11 // pred_check
          %p172 = pneg %p107
        $region22: #{tpu_custom_call.1} parent=11 // pred_check_branch
          %174 = sbr.rel (%p172) target = $region24
        $region23: #{tpu_custom_call.1} parent=11 // pred_region
          %s176 = ssub.s32 2048, 2048
          %177 = vsyncadd [#allocation9], %s176
          %s178 = sshll.u32 [#allocation8], 4
          %s179 = int_to_ptr.vmem [resolvable:$true] %s178
          %184 = dma.hbm_to_vmem [thread:$0]  %s3, 2048, %s179, [#allocation9], 128, 128, 8
        $region24: #{tpu_custom_call.1} parent=11 // pred_fallthru
          _
      $region12: #{tpu_custom_call.1} parent=5 // pred_fallthru
        _
      %p185 = scmp.lt.s32.totalorder %s18, 2
      // Predicated region
      $region25: #{tpu_custom_call.1} parent=5 // pred_check
        %p186 = pneg %p185
      $region26: #{tpu_custom_call.1} parent=5 // pred_check_branch
        %188 = sbr.rel (%p186) target = $region28
      $region27: #{tpu_custom_call.1} parent=5 // pred_region
        // Predicated region
        $region29: #{tpu_custom_call.1} parent=27 // pred_check
          %p189 = pneg %p38
        $region30: #{tpu_custom_call.1} parent=27 // pred_check_branch
          %191 = sbr.rel (%p189) target = $region32
        $region31: #{tpu_custom_call.1} parent=27 // pred_region
          %s192 = sand.u32 %s28, 1
          %s193 = scalar_lea.sflag [#allocation3], %s192
          %s194 = sand.u32 %s28, 1
          %s195 = smul.addr %s194, 512
          %s196 = scalar_lea.vmem [#allocation2], %s195
          %s197 = smul.u32 4, %s18
          %s199 = ssub.s32 8192, 8192
          %200 = vsyncadd %s193, %s199
          %s201 = smul.addr %s197, 16
          %s202 = smul.addr %s201, 128
          %s203 = scalar_lea.hbm %s0, %s202
          %s204 = sshll.u32 %s196, 4
          %s205 = int_to_ptr.vmem [resolvable:$true] %s204
          %210 = dma.hbm_to_vmem [thread:$0]  %s203, 8192, %s205, %s193, 128, 128, 8
        $region32: #{tpu_custom_call.1} parent=27 // pred_fallthru
          _
      $region28: #{tpu_custom_call.1} parent=5 // pred_fallthru
        _
      %p211 = scmp.le.s32.totalorder 1, %s18
      %p212 = scmp.lt.s32.totalorder %s18, 3
      %p213 = pnand %p211, %p212
      %p214 = pneg %p213
      // Predicated region
      $region33: #{tpu_custom_call.1} parent=5 // pred_check
        _
      $region34: #{tpu_custom_call.1} parent=5 // pred_check_branch
        %216 = sbr.rel (%p213) target = $region36
      $region35: #{tpu_custom_call.1} parent=5 // pred_region
        %s217 = ssub.s32 %s18, 1
        %s218 = sand.u32 %s31, 1
        %s219 = scalar_lea.sflag [#allocation3], %s218
        %s220 = sand.u32 %s31, 1
        %s221 = smul.addr %s220, 512
        %s222 = scalar_lea.vmem [#allocation2], %s221
        // Predicated region
        $region37: #{tpu_custom_call.1} parent=35 // pred_check
          %p223 = pneg %p44
        $region38: #{tpu_custom_call.1} parent=35 // pred_check_branch
          %225 = sbr.rel (%p223) target = $region40
        $region39: #{tpu_custom_call.1} parent=35 // pred_region
          %226 = dma.done %s219, 8192
        $region40: #{tpu_custom_call.1} parent=35 // pred_fallthru
          _
        // Predicated region
        $region41: #{tpu_custom_call.1} parent=35 // pred_check
          %p227 = pneg %p65
        $region42: #{tpu_custom_call.1} parent=35 // pred_check_branch
          %229 = sbr.rel (%p227) target = $region44
        $region43: #{tpu_custom_call.1} parent=35 // pred_region
          %230 = dma.done [#allocation6], 3072
        $region44: #{tpu_custom_call.1} parent=35 // pred_fallthru
          _
        // Predicated region
        $region45: #{tpu_custom_call.1} parent=35 // pred_check
          %p231 = pneg %p86
        $region46: #{tpu_custom_call.1} parent=35 // pred_check_branch
          %233 = sbr.rel (%p231) target = $region48
        $region47: #{tpu_custom_call.1} parent=35 // pred_region
          %234 = dma.done [#allocation6], 64
        $region48: #{tpu_custom_call.1} parent=35 // pred_fallthru
          _
        // Predicated region
        $region49: #{tpu_custom_call.1} parent=35 // pred_check
          %p235 = pneg %p107
        $region50: #{tpu_custom_call.1} parent=35 // pred_check_branch
          %237 = sbr.rel (%p235) target = $region52
        $region51: #{tpu_custom_call.1} parent=35 // pred_region
          %238 = dma.done [#allocation9], 2048
        $region52: #{tpu_custom_call.1} parent=35 // pred_fallthru
          _
        %s239 = sand.u32 %s31, 1
        %s240 = scalar_lea.sflag [#allocation3], %s239
        %s241 = sand.u32 %s31, 1
        %s242 = smul.addr %s241, 512
        %s243 = scalar_lea.vmem [#allocation2], %s242
        %p244 = pneg %p44
        %p245 = pneg %p41
        %p246 = pneg %p65
        %p247 = pneg %p62
        %p248 = pneg %p86
        %p249 = pneg %p83
        %p250 = pneg %p107
        %p251 = pneg %p104
        %p252 = pneg %p133
        %p253 = pneg %p130
        %s254 = sand.u32 %s120, 1
        %s255 = scalar_lea.sflag [#allocation4], %s254
        %s256 = sand.u32 %s120, 1
        %s257 = smul.addr %s256, 512
        %s258 = scalar_lea.vmem [#allocation10], %s257
        %s259 = smul.u32 4, %s23
        %s260 = smul.u32 4, %s23
        %v262 = vld [vmem:[%s222] sm:$0xff]
        %v263 = vld [vmem:[%s222 + $0x8] sm:$0xff]
        %v264 = vld [vmem:[%s222 + $0x10] sm:$0xff]
        %v265 = vld [vmem:[%s222 + $0x18] sm:$0xff]
        %v266 = vld [vmem:[%s222 + $0x20] sm:$0xff]
        %v267 = vld [vmem:[%s222 + $0x28] sm:$0xff]
        %v268 = vld [vmem:[%s222 + $0x30] sm:$0xff]
        %v269 = vld [vmem:[%s222 + $0x38] sm:$0xff]
        %v270 = vld [vmem:[%s222 + $0x40] sm:$0xff]
        %v271 = vld [vmem:[%s222 + $0x48] sm:$0xff]
        %v272 = vld [vmem:[%s222 + $0x50] sm:$0xff]
        %v273 = vld [vmem:[%s222 + $0x58] sm:$0xff]
        %v274 = vld [vmem:[%s222 + $0x60] sm:$0xff]
        %v275 = vld [vmem:[%s222 + $0x68] sm:$0xff]
        %v276 = vld [vmem:[%s222 + $0x70] sm:$0xff]
        %v277 = vld [vmem:[%s222 + $0x78] sm:$0xff]
        %v278 = vld [vmem:[%s222 + $0x80] sm:$0xff]
        %v279 = vld [vmem:[%s222 + $0x88] sm:$0xff]
        %v280 = vld [vmem:[%s222 + $0x90] sm:$0xff]
        %v281 = vld [vmem:[%s222 + $0x98] sm:$0xff]
        %v282 = vld [vmem:[%s222 + $0xa0] sm:$0xff]
        %v283 = vld [vmem:[%s222 + $0xa8] sm:$0xff]
        %v284 = vld [vmem:[%s222 + $0xb0] sm:$0xff]
        %v285 = vld [vmem:[%s222 + $0xb8] sm:$0xff]
        %v286 = vld [vmem:[%s222 + $0xc0] sm:$0xff]
        %v287 = vld [vmem:[%s222 + $0xc8] sm:$0xff]
        %v288 = vld [vmem:[%s222 + $0xd0] sm:$0xff]
        %v289 = vld [vmem:[%s222 + $0xd8] sm:$0xff]
        %v290 = vld [vmem:[%s222 + $0xe0] sm:$0xff]
        %v291 = vld [vmem:[%s222 + $0xe8] sm:$0xff]
        %v292 = vld [vmem:[%s222 + $0xf0] sm:$0xff]
        %v293 = vld [vmem:[%s222 + $0xf8] sm:$0xff]
        %v294 = vld [vmem:[%s222 + $0x100] sm:$0xff]
        %v295 = vld [vmem:[%s222 + $0x108] sm:$0xff]
        %v296 = vld [vmem:[%s222 + $0x110] sm:$0xff]
        %v297 = vld [vmem:[%s222 + $0x118] sm:$0xff]
        %v298 = vld [vmem:[%s222 + $0x120] sm:$0xff]
        %v299 = vld [vmem:[%s222 + $0x128] sm:$0xff]
        %v300 = vld [vmem:[%s222 + $0x130] sm:$0xff]
        %v301 = vld [vmem:[%s222 + $0x138] sm:$0xff]
        %v302 = vld [vmem:[%s222 + $0x140] sm:$0xff]
        %v303 = vld [vmem:[%s222 + $0x148] sm:$0xff]
        %v304 = vld [vmem:[%s222 + $0x150] sm:$0xff]
        %v305 = vld [vmem:[%s222 + $0x158] sm:$0xff]
        %v306 = vld [vmem:[%s222 + $0x160] sm:$0xff]
        %v307 = vld [vmem:[%s222 + $0x168] sm:$0xff]
        %v308 = vld [vmem:[%s222 + $0x170] sm:$0xff]
        %v309 = vld [vmem:[%s222 + $0x178] sm:$0xff]
        %v310 = vld [vmem:[%s222 + $0x180] sm:$0xff]
        %v311 = vld [vmem:[%s222 + $0x188] sm:$0xff]
        %v312 = vld [vmem:[%s222 + $0x190] sm:$0xff]
        %v313 = vld [vmem:[%s222 + $0x198] sm:$0xff]
        %v314 = vld [vmem:[%s222 + $0x1a0] sm:$0xff]
        %v315 = vld [vmem:[%s222 + $0x1a8] sm:$0xff]
        %v316 = vld [vmem:[%s222 + $0x1b0] sm:$0xff]
        %v317 = vld [vmem:[%s222 + $0x1b8] sm:$0xff]
        %v318 = vld [vmem:[%s222 + $0x1c0] sm:$0xff]
        %v319 = vld [vmem:[%s222 + $0x1c8] sm:$0xff]
        %v320 = vld [vmem:[%s222 + $0x1d0] sm:$0xff]
        %v321 = vld [vmem:[%s222 + $0x1d8] sm:$0xff]
        %v322 = vld [vmem:[%s222 + $0x1e0] sm:$0xff]
        %v323 = vld [vmem:[%s222 + $0x1e8] sm:$0xff]
        %v324 = vld [vmem:[%s222 + $0x1f0] sm:$0xff]
        %v325 = vld [vmem:[%s222 + $0x1f8] sm:$0xff]
        %v326 = vpack.c.bf16 %v263, %v262
        %v327 = vpack.c.bf16 %v265, %v264
        %v328 = vpack.c.bf16 %v267, %v266
        %v329 = vpack.c.bf16 %v269, %v268
        %v330 = vpack.c.bf16 %v271, %v270
        %v331 = vpack.c.bf16 %v273, %v272
        %v332 = vpack.c.bf16 %v275, %v274
        %v333 = vpack.c.bf16 %v277, %v276
        %v334 = vpack.c.bf16 %v279, %v278
        %v335 = vpack.c.bf16 %v281, %v280
        %v336 = vpack.c.bf16 %v283, %v282
        %v337 = vpack.c.bf16 %v285, %v284
        %v338 = vpack.c.bf16 %v287, %v286
        %v339 = vpack.c.bf16 %v289, %v288
        %v340 = vpack.c.bf16 %v291, %v290
        %v341 = vpack.c.bf16 %v293, %v292
        %v342 = vpack.c.bf16 %v295, %v294
        %v343 = vpack.c.bf16 %v297, %v296
        %v344 = vpack.c.bf16 %v299, %v298
        %v345 = vpack.c.bf16 %v301, %v300
        %v346 = vpack.c.bf16 %v303, %v302
        %v347 = vpack.c.bf16 %v305, %v304
        %v348 = vpack.c.bf16 %v307, %v306
        %v349 = vpack.c.bf16 %v309, %v308
        %v350 = vpack.c.bf16 %v311, %v310
        %v351 = vpack.c.bf16 %v313, %v312
        %v352 = vpack.c.bf16 %v315, %v314
        %v353 = vpack.c.bf16 %v317, %v316
        %v354 = vpack.c.bf16 %v319, %v318
        %v355 = vpack.c.bf16 %v321, %v320
        %v356 = vpack.c.bf16 %v323, %v322
        %v357 = vpack.c.bf16 %v325, %v324
        %v358 = vld [vmem:[#allocation5] sm:$0xf]
        %v359 = vld [vmem:[#allocation5 + $0x4] sm:$0xf]
        %v360 = vld [vmem:[#allocation5 + $0x8] sm:$0xf]
        %v361 = vld [vmem:[#allocation5 + $0xc] sm:$0xf]
        %v362 = vld [vmem:[#allocation5 + $0x10] sm:$0xf]
        %v363 = vld [vmem:[#allocation5 + $0x14] sm:$0xf]
        %v364 = vld [vmem:[#allocation5 + $0x18] sm:$0xf]
        %v365 = vld [vmem:[#allocation5 + $0x1c] sm:$0xf]
        %v366 = vld [vmem:[#allocation5 + $0x20] sm:$0xf]
        %v367 = vld [vmem:[#allocation5 + $0x24] sm:$0xf]
        %v368 = vld [vmem:[#allocation5 + $0x28] sm:$0xf]
        %v369 = vld [vmem:[#allocation5 + $0x2c] sm:$0xf]
        %v370 = vld [vmem:[#allocation5 + $0x30] sm:$0xf]
        %v371 = vld [vmem:[#allocation5 + $0x34] sm:$0xf]
        %v372 = vld [vmem:[#allocation5 + $0x38] sm:$0xf]
        %v373 = vld [vmem:[#allocation5 + $0x3c] sm:$0xf]
        %v374 = vld [vmem:[#allocation7] sm:$0x1]
        %v375 = vlaneseq
        %v376 = vshrl.u32 %v375, 7
        %v377 = vsub.s32 0, %v376
        %v378 = vrot.slane %v374, %v377
        %v395 = vunpack.c.l.b16 %v358
        %v396 = vunpack.c.l.b16 %v359
        %v397 = vunpack.c.l.b16 %v360
        %v398 = vunpack.c.l.b16 %v361
        %v399 = vunpack.c.l.b16 %v362
        %v400 = vunpack.c.l.b16 %v363
        %v401 = vunpack.c.l.b16 %v364
        %v402 = vunpack.c.l.b16 %v365
        %v403 = vunpack.c.l.b16 %v366
        %v404 = vunpack.c.l.b16 %v367
        %v405 = vunpack.c.l.b16 %v368
        %v406 = vunpack.c.l.b16 %v369
        %v407 = vunpack.c.l.b16 %v370
        %v408 = vunpack.c.l.b16 %v371
        %v409 = vunpack.c.l.b16 %v372
        %v410 = vunpack.c.l.b16 %v373
        %v411 = vpack.c.b16 %v396, %v395
        %v412 = vpack.c.b16 %v398, %v397
        %v413 = vpack.c.b16 %v400, %v399
        %v414 = vpack.c.b16 %v402, %v401
        %v415 = vpack.c.b16 %v404, %v403
        %v416 = vpack.c.b16 %v406, %v405
        %v417 = vpack.c.b16 %v408, %v407
        %v418 = vpack.c.b16 %v410, %v409
        %427 = vmatprep.subr.bf16.mxu0 0
        %428 = vmatpush1.bf16.msra.mxu0 %v418
        %429 = vmatprep.subr.bf16.mxu0 0
        %430 = vmatpush1.bf16.msra.mxu0 %v417
        %431 = vmatprep.subr.bf16.mxu0 0
        %432 = vmatpush1.bf16.msra.mxu0 %v416
        %433 = vmatprep.subr.bf16.mxu0 0
        %434 = vmatpush1.bf16.msra.mxu0 %v415
        %435 = vmatprep.subr.bf16.mxu0 0
        %436 = vmatpush1.bf16.msra.mxu0 %v414
        %437 = vmatprep.subr.bf16.mxu0 0
        %438 = vmatpush1.bf16.msra.mxu0 %v413
        %439 = vmatprep.subr.bf16.mxu0 0
        %440 = vmatpush1.bf16.msra.mxu0 %v412
        %441 = vmatprep.subr.bf16.mxu0 0
        %442 = vmatpush1.bf16.msra.mxu0 %v411
        %443 = vmatprep.subr.bf16.mxu0 0
        %444 = vmatpush2.bf16.msra.mxu0 0
        %445 = vmatprep.subr.bf16.mxu0 0
        %446 = vmatpush2.bf16.msra.mxu0 0
        %447 = vmatprep.subr.bf16.mxu0 0
        %448 = vmatpush2.bf16.msra.mxu0 0
        %449 = vmatprep.subr.bf16.mxu0 0
        %450 = vmatpush2.bf16.msra.mxu0 0
        %451 = vmatprep.subr.bf16.mxu0 0
        %452 = vmatpush2.bf16.msra.mxu0 0
        %453 = vmatprep.subr.bf16.mxu0 0
        %454 = vmatpush2.bf16.msra.mxu0 0
        %455 = vmatprep.subr.bf16.mxu0 0
        %456 = vmatpush2.bf16.msra.mxu0 0
        %457 = vmatprep.subr.bf16.mxu0 0
        %458 = vmatpush2.bf16.msra.mxu0 0
        %459 = vmatprep.mubr.bf16.mxu0 0
        %460 = vmatmul.mubr.bf16.gmra.mxu0 %v326
        %v461 = vpop.f32.mrf.mxu0
        %v462 = vadd.f32 %v378, %v461
        %v463 = vpop.f32.mrf.mxu0
        %v464 = vpop.f32.mrf.mxu0
        %v465 = vadd.f32 %v378, %v464
        %v466 = vpop.f32.mrf.mxu0
        %467 = vmatprep.mubr.bf16.mxu0 0
        %468 = vmatmul.mubr.bf16.gmra.mxu0 %v327
        %v469 = vpop.f32.mrf.mxu0
        %v470 = vadd.f32 %v378, %v469
        %v471 = vpop.f32.mrf.mxu0
        %v472 = vpop.f32.mrf.mxu0
        %v473 = vadd.f32 %v378, %v472
        %v474 = vpop.f32.mrf.mxu0
        %475 = vmatprep.mubr.bf16.mxu0 0
        %476 = vmatmul.mubr.bf16.gmra.mxu0 %v328
        %v477 = vpop.f32.mrf.mxu0
        %v478 = vadd.f32 %v378, %v477
        %v479 = vpop.f32.mrf.mxu0
        %v480 = vpop.f32.mrf.mxu0
        %v481 = vadd.f32 %v378, %v480
        %v482 = vpop.f32.mrf.mxu0
        %483 = vmatprep.mubr.bf16.mxu0 0
        %484 = vmatmul.mubr.bf16.gmra.mxu0 %v329
        %v485 = vpop.f32.mrf.mxu0
        %v486 = vadd.f32 %v378, %v485
        %v487 = vpop.f32.mrf.mxu0
        %v488 = vpop.f32.mrf.mxu0
        %v489 = vadd.f32 %v378, %v488
        %v490 = vpop.f32.mrf.mxu0
        %491 = vmatprep.mubr.bf16.mxu0 0
        %492 = vmatmul.mubr.bf16.gmra.mxu0 %v330
        %v493 = vpop.f32.mrf.mxu0
        %v494 = vadd.f32 %v378, %v493
        %v495 = vpop.f32.mrf.mxu0
        %v496 = vpop.f32.mrf.mxu0
        %v497 = vadd.f32 %v378, %v496
        %v498 = vpop.f32.mrf.mxu0
        %499 = vmatprep.mubr.bf16.mxu0 0
        %500 = vmatmul.mubr.bf16.gmra.mxu0 %v331
        %v501 = vpop.f32.mrf.mxu0
        %v502 = vadd.f32 %v378, %v501
        %v503 = vpop.f32.mrf.mxu0
        %v504 = vpop.f32.mrf.mxu0
        %v505 = vadd.f32 %v378, %v504
        %v506 = vpop.f32.mrf.mxu0
        %507 = vmatprep.mubr.bf16.mxu0 0
        %508 = vmatmul.mubr.bf16.gmra.mxu0 %v332
        %v509 = vpop.f32.mrf.mxu0
        %v510 = vadd.f32 %v378, %v509
        %v511 = vpop.f32.mrf.mxu0
        %v512 = vpop.f32.mrf.mxu0
        %v513 = vadd.f32 %v378, %v512
        %v514 = vpop.f32.mrf.mxu0
        %515 = vmatprep.mubr.bf16.mxu0 0
        %516 = vmatmul.mubr.bf16.gmra.mxu0 %v333
        %v517 = vpop.f32.mrf.mxu0
        %v518 = vadd.f32 %v378, %v517
        %v519 = vpop.f32.mrf.mxu0
        %v520 = vpop.f32.mrf.mxu0
        %v521 = vadd.f32 %v378, %v520
        %v522 = vpop.f32.mrf.mxu0
        %523 = vmatprep.mubr.bf16.mxu0 0
        %524 = vmatmul.mubr.bf16.gmra.mxu0 %v334
        %v525 = vpop.f32.mrf.mxu0
        %v526 = vadd.f32 %v378, %v525
        %v527 = vpop.f32.mrf.mxu0
        %v528 = vpop.f32.mrf.mxu0
        %v529 = vadd.f32 %v378, %v528
        %v530 = vpop.f32.mrf.mxu0
        %531 = vmatprep.mubr.bf16.mxu0 0
        %532 = vmatmul.mubr.bf16.gmra.mxu0 %v335
        %v533 = vpop.f32.mrf.mxu0
        %v534 = vadd.f32 %v378, %v533
        %v535 = vpop.f32.mrf.mxu0
        %v536 = vpop.f32.mrf.mxu0
        %v537 = vadd.f32 %v378, %v536
        %v538 = vpop.f32.mrf.mxu0
        %539 = vmatprep.mubr.bf16.mxu0 0
        %540 = vmatmul.mubr.bf16.gmra.mxu0 %v336
        %v541 = vpop.f32.mrf.mxu0
        %v542 = vadd.f32 %v378, %v541
        %v543 = vpop.f32.mrf.mxu0
        %v544 = vpop.f32.mrf.mxu0
        %v545 = vadd.f32 %v378, %v544
        %v546 = vpop.f32.mrf.mxu0
        %547 = vmatprep.mubr.bf16.mxu0 0
        %548 = vmatmul.mubr.bf16.gmra.mxu0 %v337
        %v549 = vpop.f32.mrf.mxu0
        %v550 = vadd.f32 %v378, %v549
        %v551 = vpop.f32.mrf.mxu0
        %v552 = vpop.f32.mrf.mxu0
        %v553 = vadd.f32 %v378, %v552
        %v554 = vpop.f32.mrf.mxu0
        %555 = vmatprep.mubr.bf16.mxu0 0
        %556 = vmatmul.mubr.bf16.gmra.mxu0 %v338
        %v557 = vpop.f32.mrf.mxu0
        %v558 = vadd.f32 %v378, %v557
        %v559 = vpop.f32.mrf.mxu0
        %v560 = vpop.f32.mrf.mxu0
        %v561 = vadd.f32 %v378, %v560
        %v562 = vpop.f32.mrf.mxu0
        %563 = vmatprep.mubr.bf16.mxu0 0
        %564 = vmatmul.mubr.bf16.gmra.mxu0 %v339
        %v565 = vpop.f32.mrf.mxu0
        %v566 = vadd.f32 %v378, %v565
        %v567 = vpop.f32.mrf.mxu0
        %v568 = vpop.f32.mrf.mxu0
        %v569 = vadd.f32 %v378, %v568
        %v570 = vpop.f32.mrf.mxu0
        %571 = vmatprep.mubr.bf16.mxu0 0
        %572 = vmatmul.mubr.bf16.gmra.mxu0 %v340
        %v573 = vpop.f32.mrf.mxu0
        %v574 = vadd.f32 %v378, %v573
        %v575 = vpop.f32.mrf.mxu0
        %v576 = vpop.f32.mrf.mxu0
        %v577 = vadd.f32 %v378, %v576
        %v578 = vpop.f32.mrf.mxu0
        %579 = vmatprep.mubr.bf16.mxu0 0
        %580 = vmatmul.mubr.bf16.gmra.mxu0 %v341
        %v581 = vpop.f32.mrf.mxu0
        %v582 = vadd.f32 %v378, %v581
        %v583 = vpop.f32.mrf.mxu0
        %v584 = vpop.f32.mrf.mxu0
        %v585 = vadd.f32 %v378, %v584
        %v586 = vpop.f32.mrf.mxu0
        %587 = vmatprep.mubr.bf16.mxu0 0
        %588 = vmatmul.mubr.bf16.gmra.mxu0 %v342
        %v589 = vpop.f32.mrf.mxu0
        %v590 = vadd.f32 %v378, %v589
        %v591 = vpop.f32.mrf.mxu0
        %v592 = vpop.f32.mrf.mxu0
        %v593 = vadd.f32 %v378, %v592
        %v594 = vpop.f32.mrf.mxu0
        %595 = vmatprep.mubr.bf16.mxu0 0
        %596 = vmatmul.mubr.bf16.gmra.mxu0 %v343
        %v597 = vpop.f32.mrf.mxu0
        %v598 = vadd.f32 %v378, %v597
        %v599 = vpop.f32.mrf.mxu0
        %v600 = vpop.f32.mrf.mxu0
        %v601 = vadd.f32 %v378, %v600
        %v602 = vpop.f32.mrf.mxu0
        %603 = vmatprep.mubr.bf16.mxu0 0
        %604 = vmatmul.mubr.bf16.gmra.mxu0 %v344
        %v605 = vpop.f32.mrf.mxu0
        %v606 = vadd.f32 %v378, %v605
        %v607 = vpop.f32.mrf.mxu0
        %v608 = vpop.f32.mrf.mxu0
        %v609 = vadd.f32 %v378, %v608
        %v610 = vpop.f32.mrf.mxu0
        %611 = vmatprep.mubr.bf16.mxu0 0
        %612 = vmatmul.mubr.bf16.gmra.mxu0 %v345
        %v613 = vpop.f32.mrf.mxu0
        %v614 = vadd.f32 %v378, %v613
        %v615 = vpop.f32.mrf.mxu0
        %v616 = vpop.f32.mrf.mxu0
        %v617 = vadd.f32 %v378, %v616
        %v618 = vpop.f32.mrf.mxu0
        %619 = vmatprep.mubr.bf16.mxu0 0
        %620 = vmatmul.mubr.bf16.gmra.mxu0 %v346
        %v621 = vpop.f32.mrf.mxu0
        %v622 = vadd.f32 %v378, %v621
        %v623 = vpop.f32.mrf.mxu0
        %v624 = vpop.f32.mrf.mxu0
        %v625 = vadd.f32 %v378, %v624
        %v626 = vpop.f32.mrf.mxu0
        %627 = vmatprep.mubr.bf16.mxu0 0
        %628 = vmatmul.mubr.bf16.gmra.mxu0 %v347
        %v629 = vpop.f32.mrf.mxu0
        %v630 = vadd.f32 %v378, %v629
        %v631 = vpop.f32.mrf.mxu0
        %v632 = vpop.f32.mrf.mxu0
        %v633 = vadd.f32 %v378, %v632
        %v634 = vpop.f32.mrf.mxu0
        %635 = vmatprep.mubr.bf16.mxu0 0
        %636 = vmatmul.mubr.bf16.gmra.mxu0 %v348
        %v637 = vpop.f32.mrf.mxu0
        %v638 = vadd.f32 %v378, %v637
        %v639 = vpop.f32.mrf.mxu0
        %v640 = vpop.f32.mrf.mxu0
        %v641 = vadd.f32 %v378, %v640
        %v642 = vpop.f32.mrf.mxu0
        %643 = vmatprep.mubr.bf16.mxu0 0
        %644 = vmatmul.mubr.bf16.gmra.mxu0 %v349
        %v645 = vpop.f32.mrf.mxu0
        %v646 = vadd.f32 %v378, %v645
        %v647 = vpop.f32.mrf.mxu0
        %v648 = vpop.f32.mrf.mxu0
        %v649 = vadd.f32 %v378, %v648
        %v650 = vpop.f32.mrf.mxu0
        %651 = vmatprep.mubr.bf16.mxu0 0
        %652 = vmatmul.mubr.bf16.gmra.mxu0 %v350
        %v653 = vpop.f32.mrf.mxu0
        %v654 = vadd.f32 %v378, %v653
        %v655 = vpop.f32.mrf.mxu0
        %v656 = vpop.f32.mrf.mxu0
        %v657 = vadd.f32 %v378, %v656
        %v658 = vpop.f32.mrf.mxu0
        %659 = vmatprep.mubr.bf16.mxu0 0
        %660 = vmatmul.mubr.bf16.gmra.mxu0 %v351
        %v661 = vpop.f32.mrf.mxu0
        %v662 = vadd.f32 %v378, %v661
        %v663 = vpop.f32.mrf.mxu0
        %v664 = vpop.f32.mrf.mxu0
        %v665 = vadd.f32 %v378, %v664
        %v666 = vpop.f32.mrf.mxu0
        %667 = vmatprep.mubr.bf16.mxu0 0
        %668 = vmatmul.mubr.bf16.gmra.mxu0 %v352
        %v669 = vpop.f32.mrf.mxu0
        %v670 = vadd.f32 %v378, %v669
        %v671 = vpop.f32.mrf.mxu0
        %v672 = vpop.f32.mrf.mxu0
        %v673 = vadd.f32 %v378, %v672
        %v674 = vpop.f32.mrf.mxu0
        %675 = vmatprep.mubr.bf16.mxu0 0
        %676 = vmatmul.mubr.bf16.gmra.mxu0 %v353
        %v677 = vpop.f32.mrf.mxu0
        %v678 = vadd.f32 %v378, %v677
        %v679 = vpop.f32.mrf.mxu0
        %v680 = vpop.f32.mrf.mxu0
        %v681 = vadd.f32 %v378, %v680
        %v682 = vpop.f32.mrf.mxu0
        %683 = vmatprep.mubr.bf16.mxu0 0
        %684 = vmatmul.mubr.bf16.gmra.mxu0 %v354
        %v685 = vpop.f32.mrf.mxu0
        %v686 = vadd.f32 %v378, %v685
        %v687 = vpop.f32.mrf.mxu0
        %v688 = vpop.f32.mrf.mxu0
        %v689 = vadd.f32 %v378, %v688
        %v690 = vpop.f32.mrf.mxu0
        %691 = vmatprep.mubr.bf16.mxu0 0
        %692 = vmatmul.mubr.bf16.gmra.mxu0 %v355
        %v693 = vpop.f32.mrf.mxu0
        %v694 = vadd.f32 %v378, %v693
        %v695 = vpop.f32.mrf.mxu0
        %v696 = vpop.f32.mrf.mxu0
        %v697 = vadd.f32 %v378, %v696
        %v698 = vpop.f32.mrf.mxu0
        %699 = vmatprep.mubr.bf16.mxu0 0
        %700 = vmatmul.mubr.bf16.gmra.mxu0 %v356
        %v701 = vpop.f32.mrf.mxu0
        %v702 = vadd.f32 %v378, %v701
        %v703 = vpop.f32.mrf.mxu0
        %v704 = vpop.f32.mrf.mxu0
        %v705 = vadd.f32 %v378, %v704
        %v706 = vpop.f32.mrf.mxu0
        %707 = vmatprep.mubr.bf16.mxu0 0
        %708 = vmatmul.mubr.bf16.gmra.mxu0 %v357
        %v709 = vpop.f32.mrf.mxu0
        %v710 = vadd.f32 %v378, %v709
        %v711 = vpop.f32.mrf.mxu0
        %v712 = vpop.f32.mrf.mxu0
        %v713 = vadd.f32 %v378, %v712
        %v714 = vpop.f32.mrf.mxu0
        %715 = vdwg.mxu0
        %v716 = vtanh.pop %v462
        %v717 = vtanh.pop %v465
        %v718 = vtanh.pop %v470
        %v719 = vtanh.pop %v473
        %v720 = vtanh.pop %v478
        %v721 = vtanh.pop %v481
        %v722 = vtanh.pop %v486
        %v723 = vtanh.pop %v489
        %v724 = vtanh.pop %v494
        %v725 = vtanh.pop %v497
        %v726 = vtanh.pop %v502
        %v727 = vtanh.pop %v505
        %v728 = vtanh.pop %v510
        %v729 = vtanh.pop %v513
        %v730 = vtanh.pop %v518
        %v731 = vtanh.pop %v521
        %v732 = vtanh.pop %v526
        %v733 = vtanh.pop %v529
        %v734 = vtanh.pop %v534
        %v735 = vtanh.pop %v537
        %v736 = vtanh.pop %v542
        %v737 = vtanh.pop %v545
        %v738 = vtanh.pop %v550
        %v739 = vtanh.pop %v553
        %v740 = vtanh.pop %v558
        %v741 = vtanh.pop %v561
        %v742 = vtanh.pop %v566
        %v743 = vtanh.pop %v569
        %v744 = vtanh.pop %v574
        %v745 = vtanh.pop %v577
        %v746 = vtanh.pop %v582
        %v747 = vtanh.pop %v585
        %v748 = vtanh.pop %v590
        %v749 = vtanh.pop %v593
        %v750 = vtanh.pop %v598
        %v751 = vtanh.pop %v601
        %v752 = vtanh.pop %v606
        %v753 = vtanh.pop %v609
        %v754 = vtanh.pop %v614
        %v755 = vtanh.pop %v617
        %v756 = vtanh.pop %v622
        %v757 = vtanh.pop %v625
        %v758 = vtanh.pop %v630
        %v759 = vtanh.pop %v633
        %v760 = vtanh.pop %v638
        %v761 = vtanh.pop %v641
        %v762 = vtanh.pop %v646
        %v763 = vtanh.pop %v649
        %v764 = vtanh.pop %v654
        %v765 = vtanh.pop %v657
        %v766 = vtanh.pop %v662
        %v767 = vtanh.pop %v665
        %v768 = vtanh.pop %v670
        %v769 = vtanh.pop %v673
        %v770 = vtanh.pop %v678
        %v771 = vtanh.pop %v681
        %v772 = vtanh.pop %v686
        %v773 = vtanh.pop %v689
        %v774 = vtanh.pop %v694
        %v775 = vtanh.pop %v697
        %v776 = vtanh.pop %v702
        %v777 = vtanh.pop %v705
        %v778 = vtanh.pop %v710
        %v779 = vtanh.pop %v713
        %v780 = vpack.c.bf16 %v717, %v716
        %v781 = vpack.c.bf16 %v719, %v718
        %v782 = vpack.c.bf16 %v721, %v720
        %v783 = vpack.c.bf16 %v723, %v722
        %v784 = vpack.c.bf16 %v725, %v724
        %v785 = vpack.c.bf16 %v727, %v726
        %v786 = vpack.c.bf16 %v729, %v728
        %v787 = vpack.c.bf16 %v731, %v730
        %v788 = vpack.c.bf16 %v733, %v732
        %v789 = vpack.c.bf16 %v735, %v734
        %v790 = vpack.c.bf16 %v737, %v736
        %v791 = vpack.c.bf16 %v739, %v738
        %v792 = vpack.c.bf16 %v741, %v740
        %v793 = vpack.c.bf16 %v743, %v742
        %v794 = vpack.c.bf16 %v745, %v744
        %v795 = vpack.c.bf16 %v747, %v746
        %v796 = vpack.c.bf16 %v749, %v748
        %v797 = vpack.c.bf16 %v751, %v750
        %v798 = vpack.c.bf16 %v753, %v752
        %v799 = vpack.c.bf16 %v755, %v754
        %v800 = vpack.c.bf16 %v757, %v756
        %v801 = vpack.c.bf16 %v759, %v758
        %v802 = vpack.c.bf16 %v761, %v760
        %v803 = vpack.c.bf16 %v763, %v762
        %v804 = vpack.c.bf16 %v765, %v764
        %v805 = vpack.c.bf16 %v767, %v766
        %v806 = vpack.c.bf16 %v769, %v768
        %v807 = vpack.c.bf16 %v771, %v770
        %v808 = vpack.c.bf16 %v773, %v772
        %v809 = vpack.c.bf16 %v775, %v774
        %v810 = vpack.c.bf16 %v777, %v776
        %v811 = vpack.c.bf16 %v779, %v778
        %s812 = scalar_lea.vmem [#allocation5], 64
        %v813 = vld [vmem:[%s812] sm:$0xf]
        %v814 = vld [vmem:[%s812 + $0x4] sm:$0xf]
        %v815 = vld [vmem:[%s812 + $0x8] sm:$0xf]
        %v816 = vld [vmem:[%s812 + $0xc] sm:$0xf]
        %v817 = vld [vmem:[%s812 + $0x10] sm:$0xf]
        %v818 = vld [vmem:[%s812 + $0x14] sm:$0xf]
        %v819 = vld [vmem:[%s812 + $0x18] sm:$0xf]
        %v820 = vld [vmem:[%s812 + $0x1c] sm:$0xf]
        %v821 = vld [vmem:[%s812 + $0x20] sm:$0xf]
        %v822 = vld [vmem:[%s812 + $0x24] sm:$0xf]
        %v823 = vld [vmem:[%s812 + $0x28] sm:$0xf]
        %v824 = vld [vmem:[%s812 + $0x2c] sm:$0xf]
        %v825 = vld [vmem:[%s812 + $0x30] sm:$0xf]
        %v826 = vld [vmem:[%s812 + $0x34] sm:$0xf]
        %v827 = vld [vmem:[%s812 + $0x38] sm:$0xf]
        %v828 = vld [vmem:[%s812 + $0x3c] sm:$0xf]
        %v829 = vld [vmem:[#allocation7 + $0x1] sm:$0x1]
        %v830 = vlaneseq
        %v831 = vshrl.u32 %v830, 7
        %v832 = vsub.s32 0, %v831
        %v833 = vrot.slane %v829, %v832
        %v850 = vunpack.c.l.b16 %v813
        %v851 = vunpack.c.l.b16 %v814
        %v852 = vunpack.c.l.b16 %v815
        %v853 = vunpack.c.l.b16 %v816
        %v854 = vunpack.c.l.b16 %v817
        %v855 = vunpack.c.l.b16 %v818
        %v856 = vunpack.c.l.b16 %v819
        %v857 = vunpack.c.l.b16 %v820
        %v858 = vunpack.c.l.b16 %v821
        %v859 = vunpack.c.l.b16 %v822
        %v860 = vunpack.c.l.b16 %v823
        %v861 = vunpack.c.l.b16 %v824
        %v862 = vunpack.c.l.b16 %v825
        %v863 = vunpack.c.l.b16 %v826
        %v864 = vunpack.c.l.b16 %v827
        %v865 = vunpack.c.l.b16 %v828
        %v866 = vpack.c.b16 %v851, %v850
        %v867 = vpack.c.b16 %v853, %v852
        %v868 = vpack.c.b16 %v855, %v854
        %v869 = vpack.c.b16 %v857, %v856
        %v870 = vpack.c.b16 %v859, %v858
        %v871 = vpack.c.b16 %v861, %v860
        %v872 = vpack.c.b16 %v863, %v862
        %v873 = vpack.c.b16 %v865, %v864
        %882 = vmatprep.subr.bf16.mxu0 0
        %883 = vmatpush1.bf16.msra.mxu0 %v873
        %884 = vmatprep.subr.bf16.mxu0 0
        %885 = vmatpush1.bf16.msra.mxu0 %v872
        %886 = vmatprep.subr.bf16.mxu0 0
        %887 = vmatpush1.bf16.msra.mxu0 %v871
        %888 = vmatprep.subr.bf16.mxu0 0
        %889 = vmatpush1.bf16.msra.mxu0 %v870
        %890 = vmatprep.subr.bf16.mxu0 0
        %891 = vmatpush1.bf16.msra.mxu0 %v869
        %892 = vmatprep.subr.bf16.mxu0 0
        %893 = vmatpush1.bf16.msra.mxu0 %v868
        %894 = vmatprep.subr.bf16.mxu0 0
        %895 = vmatpush1.bf16.msra.mxu0 %v867
        %896 = vmatprep.subr.bf16.mxu0 0
        %897 = vmatpush1.bf16.msra.mxu0 %v866
        %898 = vmatprep.subr.bf16.mxu0 0
        %899 = vmatpush2.bf16.msra.mxu0 0
        %900 = vmatprep.subr.bf16.mxu0 0
        %901 = vmatpush2.bf16.msra.mxu0 0
        %902 = vmatprep.subr.bf16.mxu0 0
        %903 = vmatpush2.bf16.msra.mxu0 0
        %904 = vmatprep.subr.bf16.mxu0 0
        %905 = vmatpush2.bf16.msra.mxu0 0
        %906 = vmatprep.subr.bf16.mxu0 0
        %907 = vmatpush2.bf16.msra.mxu0 0
        %908 = vmatprep.subr.bf16.mxu0 0
        %909 = vmatpush2.bf16.msra.mxu0 0
        %910 = vmatprep.subr.bf16.mxu0 0
        %911 = vmatpush2.bf16.msra.mxu0 0
        %912 = vmatprep.subr.bf16.mxu0 0
        %913 = vmatpush2.bf16.msra.mxu0 0
        %914 = vmatprep.mubr.bf16.mxu0 0
        %915 = vmatmul.mubr.bf16.gmra.mxu0 %v780
        %v916 = vpop.f32.mrf.mxu0
        %v917 = vadd.f32 %v833, %v916
        %v918 = vpop.f32.mrf.mxu0
        %v919 = vpop.f32.mrf.mxu0
        %v920 = vadd.f32 %v833, %v919
        %v921 = vpop.f32.mrf.mxu0
        %922 = vmatprep.mubr.bf16.mxu0 0
        %923 = vmatmul.mubr.bf16.gmra.mxu0 %v781
        %v924 = vpop.f32.mrf.mxu0
        %v925 = vadd.f32 %v833, %v924
        %v926 = vpop.f32.mrf.mxu0
        %v927 = vpop.f32.mrf.mxu0
        %v928 = vadd.f32 %v833, %v927
        %v929 = vpop.f32.mrf.mxu0
        %930 = vmatprep.mubr.bf16.mxu0 0
        %931 = vmatmul.mubr.bf16.gmra.mxu0 %v782
        %v932 = vpop.f32.mrf.mxu0
        %v933 = vadd.f32 %v833, %v932
        %v934 = vpop.f32.mrf.mxu0
        %v935 = vpop.f32.mrf.mxu0
        %v936 = vadd.f32 %v833, %v935
        %v937 = vpop.f32.mrf.mxu0
        %938 = vmatprep.mubr.bf16.mxu0 0
        %939 = vmatmul.mubr.bf16.gmra.mxu0 %v783
        %v940 = vpop.f32.mrf.mxu0
        %v941 = vadd.f32 %v833, %v940
        %v942 = vpop.f32.mrf.mxu0
        %v943 = vpop.f32.mrf.mxu0
        %v944 = vadd.f32 %v833, %v943
        %v945 = vpop.f32.mrf.mxu0
        %946 = vmatprep.mubr.bf16.mxu0 0
        %947 = vmatmul.mubr.bf16.gmra.mxu0 %v784
        %v948 = vpop.f32.mrf.mxu0
        %v949 = vadd.f32 %v833, %v948
        %v950 = vpop.f32.mrf.mxu0
        %v951 = vpop.f32.mrf.mxu0
        %v952 = vadd.f32 %v833, %v951
        %v953 = vpop.f32.mrf.mxu0
        %954 = vmatprep.mubr.bf16.mxu0 0
        %955 = vmatmul.mubr.bf16.gmra.mxu0 %v785
        %v956 = vpop.f32.mrf.mxu0
        %v957 = vadd.f32 %v833, %v956
        %v958 = vpop.f32.mrf.mxu0
        %v959 = vpop.f32.mrf.mxu0
        %v960 = vadd.f32 %v833, %v959
        %v961 = vpop.f32.mrf.mxu0
        %962 = vmatprep.mubr.bf16.mxu0 0
        %963 = vmatmul.mubr.bf16.gmra.mxu0 %v786
        %v964 = vpop.f32.mrf.mxu0
        %v965 = vadd.f32 %v833, %v964
        %v966 = vpop.f32.mrf.mxu0
        %v967 = vpop.f32.mrf.mxu0
        %v968 = vadd.f32 %v833, %v967
        %v969 = vpop.f32.mrf.mxu0
        %970 = vmatprep.mubr.bf16.mxu0 0
        %971 = vmatmul.mubr.bf16.gmra.mxu0 %v787
        %v972 = vpop.f32.mrf.mxu0
        %v973 = vadd.f32 %v833, %v972
        %v974 = vpop.f32.mrf.mxu0
        %v975 = vpop.f32.mrf.mxu0
        %v976 = vadd.f32 %v833, %v975
        %v977 = vpop.f32.mrf.mxu0
        %978 = vmatprep.mubr.bf16.mxu0 0
        %979 = vmatmul.mubr.bf16.gmra.mxu0 %v788
        %v980 = vpop.f32.mrf.mxu0
        %v981 = vadd.f32 %v833, %v980
        %v982 = vpop.f32.mrf.mxu0
        %v983 = vpop.f32.mrf.mxu0
        %v984 = vadd.f32 %v833, %v983
        %v985 = vpop.f32.mrf.mxu0
        %986 = vmatprep.mubr.bf16.mxu0 0
        %987 = vmatmul.mubr.bf16.gmra.mxu0 %v789
        %v988 = vpop.f32.mrf.mxu0
        %v989 = vadd.f32 %v833, %v988
        %v990 = vpop.f32.mrf.mxu0
        %v991 = vpop.f32.mrf.mxu0
        %v992 = vadd.f32 %v833, %v991
        %v993 = vpop.f32.mrf.mxu0
        %994 = vmatprep.mubr.bf16.mxu0 0
        %995 = vmatmul.mubr.bf16.gmra.mxu0 %v790
        %v996 = vpop.f32.mrf.mxu0
        %v997 = vadd.f32 %v833, %v996
        %v998 = vpop.f32.mrf.mxu0
        %v999 = vpop.f32.mrf.mxu0
        %v1000 = vadd.f32 %v833, %v999
        %v1001 = vpop.f32.mrf.mxu0
        %1002 = vmatprep.mubr.bf16.mxu0 0
        %1003 = vmatmul.mubr.bf16.gmra.mxu0 %v791
        %v1004 = vpop.f32.mrf.mxu0
        %v1005 = vadd.f32 %v833, %v1004
        %v1006 = vpop.f32.mrf.mxu0
        %v1007 = vpop.f32.mrf.mxu0
        %v1008 = vadd.f32 %v833, %v1007
        %v1009 = vpop.f32.mrf.mxu0
        %1010 = vmatprep.mubr.bf16.mxu0 0
        %1011 = vmatmul.mubr.bf16.gmra.mxu0 %v792
        %v1012 = vpop.f32.mrf.mxu0
        %v1013 = vadd.f32 %v833, %v1012
        %v1014 = vpop.f32.mrf.mxu0
        %v1015 = vpop.f32.mrf.mxu0
        %v1016 = vadd.f32 %v833, %v1015
        %v1017 = vpop.f32.mrf.mxu0
        %1018 = vmatprep.mubr.bf16.mxu0 0
        %1019 = vmatmul.mubr.bf16.gmra.mxu0 %v793
        %v1020 = vpop.f32.mrf.mxu0
        %v1021 = vadd.f32 %v833, %v1020
        %v1022 = vpop.f32.mrf.mxu0
        %v1023 = vpop.f32.mrf.mxu0
        %v1024 = vadd.f32 %v833, %v1023
        %v1025 = vpop.f32.mrf.mxu0
        %1026 = vmatprep.mubr.bf16.mxu0 0
        %1027 = vmatmul.mubr.bf16.gmra.mxu0 %v794
        %v1028 = vpop.f32.mrf.mxu0
        %v1029 = vadd.f32 %v833, %v1028
        %v1030 = vpop.f32.mrf.mxu0
        %v1031 = vpop.f32.mrf.mxu0
        %v1032 = vadd.f32 %v833, %v1031
        %v1033 = vpop.f32.mrf.mxu0
        %1034 = vmatprep.mubr.bf16.mxu0 0
        %1035 = vmatmul.mubr.bf16.gmra.mxu0 %v795
        %v1036 = vpop.f32.mrf.mxu0
        %v1037 = vadd.f32 %v833, %v1036
        %v1038 = vpop.f32.mrf.mxu0
        %v1039 = vpop.f32.mrf.mxu0
        %v1040 = vadd.f32 %v833, %v1039
        %v1041 = vpop.f32.mrf.mxu0
        %1042 = vmatprep.mubr.bf16.mxu0 0
        %1043 = vmatmul.mubr.bf16.gmra.mxu0 %v796
        %v1044 = vpop.f32.mrf.mxu0
        %v1045 = vadd.f32 %v833, %v1044
        %v1046 = vpop.f32.mrf.mxu0
        %v1047 = vpop.f32.mrf.mxu0
        %v1048 = vadd.f32 %v833, %v1047
        %v1049 = vpop.f32.mrf.mxu0
        %1050 = vmatprep.mubr.bf16.mxu0 0
        %1051 = vmatmul.mubr.bf16.gmra.mxu0 %v797
        %v1052 = vpop.f32.mrf.mxu0
        %v1053 = vadd.f32 %v833, %v1052
        %v1054 = vpop.f32.mrf.mxu0
        %v1055 = vpop.f32.mrf.mxu0
        %v1056 = vadd.f32 %v833, %v1055
        %v1057 = vpop.f32.mrf.mxu0
        %1058 = vmatprep.mubr.bf16.mxu0 0
        %1059 = vmatmul.mubr.bf16.gmra.mxu0 %v798
        %v1060 = vpop.f32.mrf.mxu0
        %v1061 = vadd.f32 %v833, %v1060
        %v1062 = vpop.f32.mrf.mxu0
        %v1063 = vpop.f32.mrf.mxu0
        %v1064 = vadd.f32 %v833, %v1063
        %v1065 = vpop.f32.mrf.mxu0
        %1066 = vmatprep.mubr.bf16.mxu0 0
        %1067 = vmatmul.mubr.bf16.gmra.mxu0 %v799
        %v1068 = vpop.f32.mrf.mxu0
        %v1069 = vadd.f32 %v833, %v1068
        %v1070 = vpop.f32.mrf.mxu0
        %v1071 = vpop.f32.mrf.mxu0
        %v1072 = vadd.f32 %v833, %v1071
        %v1073 = vpop.f32.mrf.mxu0
        %1074 = vmatprep.mubr.bf16.mxu0 0
        %1075 = vmatmul.mubr.bf16.gmra.mxu0 %v800
        %v1076 = vpop.f32.mrf.mxu0
        %v1077 = vadd.f32 %v833, %v1076
        %v1078 = vpop.f32.mrf.mxu0
        %v1079 = vpop.f32.mrf.mxu0
        %v1080 = vadd.f32 %v833, %v1079
        %v1081 = vpop.f32.mrf.mxu0
        %1082 = vmatprep.mubr.bf16.mxu0 0
        %1083 = vmatmul.mubr.bf16.gmra.mxu0 %v801
        %v1084 = vpop.f32.mrf.mxu0
        %v1085 = vadd.f32 %v833, %v1084
        %v1086 = vpop.f32.mrf.mxu0
        %v1087 = vpop.f32.mrf.mxu0
        %v1088 = vadd.f32 %v833, %v1087
        %v1089 = vpop.f32.mrf.mxu0
        %1090 = vmatprep.mubr.bf16.mxu0 0
        %1091 = vmatmul.mubr.bf16.gmra.mxu0 %v802
        %v1092 = vpop.f32.mrf.mxu0
        %v1093 = vadd.f32 %v833, %v1092
        %v1094 = vpop.f32.mrf.mxu0
        %v1095 = vpop.f32.mrf.mxu0
        %v1096 = vadd.f32 %v833, %v1095
        %v1097 = vpop.f32.mrf.mxu0
        %1098 = vmatprep.mubr.bf16.mxu0 0
        %1099 = vmatmul.mubr.bf16.gmra.mxu0 %v803
        %v1100 = vpop.f32.mrf.mxu0
        %v1101 = vadd.f32 %v833, %v1100
        %v1102 = vpop.f32.mrf.mxu0
        %v1103 = vpop.f32.mrf.mxu0
        %v1104 = vadd.f32 %v833, %v1103
        %v1105 = vpop.f32.mrf.mxu0
        %1106 = vmatprep.mubr.bf16.mxu0 0
        %1107 = vmatmul.mubr.bf16.gmra.mxu0 %v804
        %v1108 = vpop.f32.mrf.mxu0
        %v1109 = vadd.f32 %v833, %v1108
        %v1110 = vpop.f32.mrf.mxu0
        %v1111 = vpop.f32.mrf.mxu0
        %v1112 = vadd.f32 %v833, %v1111
        %v1113 = vpop.f32.mrf.mxu0
        %1114 = vmatprep.mubr.bf16.mxu0 0
        %1115 = vmatmul.mubr.bf16.gmra.mxu0 %v805
        %v1116 = vpop.f32.mrf.mxu0
        %v1117 = vadd.f32 %v833, %v1116
        %v1118 = vpop.f32.mrf.mxu0
        %v1119 = vpop.f32.mrf.mxu0
        %v1120 = vadd.f32 %v833, %v1119
        %v1121 = vpop.f32.mrf.mxu0
        %1122 = vmatprep.mubr.bf16.mxu0 0
        %1123 = vmatmul.mubr.bf16.gmra.mxu0 %v806
        %v1124 = vpop.f32.mrf.mxu0
        %v1125 = vadd.f32 %v833, %v1124
        %v1126 = vpop.f32.mrf.mxu0
        %v1127 = vpop.f32.mrf.mxu0
        %v1128 = vadd.f32 %v833, %v1127
        %v1129 = vpop.f32.mrf.mxu0
        %1130 = vmatprep.mubr.bf16.mxu0 0
        %1131 = vmatmul.mubr.bf16.gmra.mxu0 %v807
        %v1132 = vpop.f32.mrf.mxu0
        %v1133 = vadd.f32 %v833, %v1132
        %v1134 = vpop.f32.mrf.mxu0
        %v1135 = vpop.f32.mrf.mxu0
        %v1136 = vadd.f32 %v833, %v1135
        %v1137 = vpop.f32.mrf.mxu0
        %1138 = vmatprep.mubr.bf16.mxu0 0
        %1139 = vmatmul.mubr.bf16.gmra.mxu0 %v808
        %v1140 = vpop.f32.mrf.mxu0
        %v1141 = vadd.f32 %v833, %v1140
        %v1142 = vpop.f32.mrf.mxu0
        %v1143 = vpop.f32.mrf.mxu0
        %v1144 = vadd.f32 %v833, %v1143
        %v1145 = vpop.f32.mrf.mxu0
        %1146 = vmatprep.mubr.bf16.mxu0 0
        %1147 = vmatmul.mubr.bf16.gmra.mxu0 %v809
        %v1148 = vpop.f32.mrf.mxu0
        %v1149 = vadd.f32 %v833, %v1148
        %v1150 = vpop.f32.mrf.mxu0
        %v1151 = vpop.f32.mrf.mxu0
        %v1152 = vadd.f32 %v833, %v1151
        %v1153 = vpop.f32.mrf.mxu0
        %1154 = vmatprep.mubr.bf16.mxu0 0
        %1155 = vmatmul.mubr.bf16.gmra.mxu0 %v810
        %v1156 = vpop.f32.mrf.mxu0
        %v1157 = vadd.f32 %v833, %v1156
        %v1158 = vpop.f32.mrf.mxu0
        %v1159 = vpop.f32.mrf.mxu0
        %v1160 = vadd.f32 %v833, %v1159
        %v1161 = vpop.f32.mrf.mxu0
        %1162 = vmatprep.mubr.bf16.mxu0 0
        %1163 = vmatmul.mubr.bf16.gmra.mxu0 %v811
        %v1164 = vpop.f32.mrf.mxu0
        %v1165 = vadd.f32 %v833, %v1164
        %v1166 = vpop.f32.mrf.mxu0
        %v1167 = vpop.f32.mrf.mxu0
        %v1168 = vadd.f32 %v833, %v1167
        %v1169 = vpop.f32.mrf.mxu0
        %1170 = vdwg.mxu0
        %v1171 = vtanh.pop %v917
        %v1172 = vtanh.pop %v920
        %v1173 = vtanh.pop %v925
        %v1174 = vtanh.pop %v928
        %v1175 = vtanh.pop %v933
        %v1176 = vtanh.pop %v936
        %v1177 = vtanh.pop %v941
        %v1178 = vtanh.pop %v944
        %v1179 = vtanh.pop %v949
        %v1180 = vtanh.pop %v952
        %v1181 = vtanh.pop %v957
        %v1182 = vtanh.pop %v960
        %v1183 = vtanh.pop %v965
        %v1184 = vtanh.pop %v968
        %v1185 = vtanh.pop %v973
        %v1186 = vtanh.pop %v976
        %v1187 = vtanh.pop %v981
        %v1188 = vtanh.pop %v984
        %v1189 = vtanh.pop %v989
        %v1190 = vtanh.pop %v992
        %v1191 = vtanh.pop %v997
        %v1192 = vtanh.pop %v1000
        %v1193 = vtanh.pop %v1005
        %v1194 = vtanh.pop %v1008
        %v1195 = vtanh.pop %v1013
        %v1196 = vtanh.pop %v1016
        %v1197 = vtanh.pop %v1021
        %v1198 = vtanh.pop %v1024
        %v1199 = vtanh.pop %v1029
        %v1200 = vtanh.pop %v1032
        %v1201 = vtanh.pop %v1037
        %v1202 = vtanh.pop %v1040
        %v1203 = vtanh.pop %v1045
        %v1204 = vtanh.pop %v1048
        %v1205 = vtanh.pop %v1053
        %v1206 = vtanh.pop %v1056
        %v1207 = vtanh.pop %v1061
        %v1208 = vtanh.pop %v1064
        %v1209 = vtanh.pop %v1069
        %v1210 = vtanh.pop %v1072
        %v1211 = vtanh.pop %v1077
        %v1212 = vtanh.pop %v1080
        %v1213 = vtanh.pop %v1085
        %v1214 = vtanh.pop %v1088
        %v1215 = vtanh.pop %v1093
        %v1216 = vtanh.pop %v1096
        %v1217 = vtanh.pop %v1101
        %v1218 = vtanh.pop %v1104
        %v1219 = vtanh.pop %v1109
        %v1220 = vtanh.pop %v1112
        %v1221 = vtanh.pop %v1117
        %v1222 = vtanh.pop %v1120
        %v1223 = vtanh.pop %v1125
        %v1224 = vtanh.pop %v1128
        %v1225 = vtanh.pop %v1133
        %v1226 = vtanh.pop %v1136
        %v1227 = vtanh.pop %v1141
        %v1228 = vtanh.pop %v1144
        %v1229 = vtanh.pop %v1149
        %v1230 = vtanh.pop %v1152
        %v1231 = vtanh.pop %v1157
        %v1232 = vtanh.pop %v1160
        %v1233 = vtanh.pop %v1165
        %v1234 = vtanh.pop %v1168
        %v1235 = vpack.c.bf16 %v1172, %v1171
        %v1236 = vpack.c.bf16 %v1174, %v1173
        %v1237 = vpack.c.bf16 %v1176, %v1175
        %v1238 = vpack.c.bf16 %v1178, %v1177
        %v1239 = vpack.c.bf16 %v1180, %v1179
        %v1240 = vpack.c.bf16 %v1182, %v1181
        %v1241 = vpack.c.bf16 %v1184, %v1183
        %v1242 = vpack.c.bf16 %v1186, %v1185
        %v1243 = vpack.c.bf16 %v1188, %v1187
        %v1244 = vpack.c.bf16 %v1190, %v1189
        %v1245 = vpack.c.bf16 %v1192, %v1191
        %v1246 = vpack.c.bf16 %v1194, %v1193
        %v1247 = vpack.c.bf16 %v1196, %v1195
        %v1248 = vpack.c.bf16 %v1198, %v1197
        %v1249 = vpack.c.bf16 %v1200, %v1199
        %v1250 = vpack.c.bf16 %v1202, %v1201
        %v1251 = vpack.c.bf16 %v1204, %v1203
        %v1252 = vpack.c.bf16 %v1206, %v1205
        %v1253 = vpack.c.bf16 %v1208, %v1207
        %v1254 = vpack.c.bf16 %v1210, %v1209
        %v1255 = vpack.c.bf16 %v1212, %v1211
        %v1256 = vpack.c.bf16 %v1214, %v1213
        %v1257 = vpack.c.bf16 %v1216, %v1215
        %v1258 = vpack.c.bf16 %v1218, %v1217
        %v1259 = vpack.c.bf16 %v1220, %v1219
        %v1260 = vpack.c.bf16 %v1222, %v1221
        %v1261 = vpack.c.bf16 %v1224, %v1223
        %v1262 = vpack.c.bf16 %v1226, %v1225
        %v1263 = vpack.c.bf16 %v1228, %v1227
        %v1264 = vpack.c.bf16 %v1230, %v1229
        %v1265 = vpack.c.bf16 %v1232, %v1231
        %v1266 = vpack.c.bf16 %v1234, %v1233
        %s1267 = scalar_lea.vmem [#allocation5], 128
        %v1268 = vld [vmem:[%s1267] sm:$0xf]
        %v1269 = vld [vmem:[%s1267 + $0x4] sm:$0xf]
        %v1270 = vld [vmem:[%s1267 + $0x8] sm:$0xf]
        %v1271 = vld [vmem:[%s1267 + $0xc] sm:$0xf]
        %v1272 = vld [vmem:[%s1267 + $0x10] sm:$0xf]
        %v1273 = vld [vmem:[%s1267 + $0x14] sm:$0xf]
        %v1274 = vld [vmem:[%s1267 + $0x18] sm:$0xf]
        %v1275 = vld [vmem:[%s1267 + $0x1c] sm:$0xf]
        %v1276 = vld [vmem:[%s1267 + $0x20] sm:$0xf]
        %v1277 = vld [vmem:[%s1267 + $0x24] sm:$0xf]
        %v1278 = vld [vmem:[%s1267 + $0x28] sm:$0xf]
        %v1279 = vld [vmem:[%s1267 + $0x2c] sm:$0xf]
        %v1280 = vld [vmem:[%s1267 + $0x30] sm:$0xf]
        %v1281 = vld [vmem:[%s1267 + $0x34] sm:$0xf]
        %v1282 = vld [vmem:[%s1267 + $0x38] sm:$0xf]
        %v1283 = vld [vmem:[%s1267 + $0x3c] sm:$0xf]
        %v1284 = vld [vmem:[#allocation7 + $0x2] sm:$0x1]
        %v1285 = vlaneseq
        %v1286 = vshrl.u32 %v1285, 7
        %v1287 = vsub.s32 0, %v1286
        %v1288 = vrot.slane %v1284, %v1287
        %v1305 = vunpack.c.l.b16 %v1268
        %v1306 = vunpack.c.l.b16 %v1269
        %v1307 = vunpack.c.l.b16 %v1270
        %v1308 = vunpack.c.l.b16 %v1271
        %v1309 = vunpack.c.l.b16 %v1272
        %v1310 = vunpack.c.l.b16 %v1273
        %v1311 = vunpack.c.l.b16 %v1274
        %v1312 = vunpack.c.l.b16 %v1275
        %v1313 = vunpack.c.l.b16 %v1276
        %v1314 = vunpack.c.l.b16 %v1277
        %v1315 = vunpack.c.l.b16 %v1278
        %v1316 = vunpack.c.l.b16 %v1279
        %v1317 = vunpack.c.l.b16 %v1280
        %v1318 = vunpack.c.l.b16 %v1281
        %v1319 = vunpack.c.l.b16 %v1282
        %v1320 = vunpack.c.l.b16 %v1283
        %v1321 = vpack.c.b16 %v1306, %v1305
        %v1322 = vpack.c.b16 %v1308, %v1307
        %v1323 = vpack.c.b16 %v1310, %v1309
        %v1324 = vpack.c.b16 %v1312, %v1311
        %v1325 = vpack.c.b16 %v1314, %v1313
        %v1326 = vpack.c.b16 %v1316, %v1315
        %v1327 = vpack.c.b16 %v1318, %v1317
        %v1328 = vpack.c.b16 %v1320, %v1319
        %1337 = vmatprep.subr.bf16.mxu0 0
        %1338 = vmatpush1.bf16.msra.mxu0 %v1328
        %1339 = vmatprep.subr.bf16.mxu0 0
        %1340 = vmatpush1.bf16.msra.mxu0 %v1327
        %1341 = vmatprep.subr.bf16.mxu0 0
        %1342 = vmatpush1.bf16.msra.mxu0 %v1326
        %1343 = vmatprep.subr.bf16.mxu0 0
        %1344 = vmatpush1.bf16.msra.mxu0 %v1325
        %1345 = vmatprep.subr.bf16.mxu0 0
        %1346 = vmatpush1.bf16.msra.mxu0 %v1324
        %1347 = vmatprep.subr.bf16.mxu0 0
        %1348 = vmatpush1.bf16.msra.mxu0 %v1323
        %1349 = vmatprep.subr.bf16.mxu0 0
        %1350 = vmatpush1.bf16.msra.mxu0 %v1322
        %1351 = vmatprep.subr.bf16.mxu0 0
        %1352 = vmatpush1.bf16.msra.mxu0 %v1321
        %1353 = vmatprep.subr.bf16.mxu0 0
        %1354 = vmatpush2.bf16.msra.mxu0 0
        %1355 = vmatprep.subr.bf16.mxu0 0
        %1356 = vmatpush2.bf16.msra.mxu0 0
        %1357 = vmatprep.subr.bf16.mxu0 0
        %1358 = vmatpush2.bf16.msra.mxu0 0
        %1359 = vmatprep.subr.bf16.mxu0 0
        %1360 = vmatpush2.bf16.msra.mxu0 0
        %1361 = vmatprep.subr.bf16.mxu0 0
        %1362 = vmatpush2.bf16.msra.mxu0 0
        %1363 = vmatprep.subr.bf16.mxu0 0
        %1364 = vmatpush2.bf16.msra.mxu0 0
        %1365 = vmatprep.subr.bf16.mxu0 0
        %1366 = vmatpush2.bf16.msra.mxu0 0
        %1367 = vmatprep.subr.bf16.mxu0 0
        %1368 = vmatpush2.bf16.msra.mxu0 0
        %1369 = vmatprep.mubr.bf16.mxu0 0
        %1370 = vmatmul.mubr.bf16.gmra.mxu0 %v1235
        %v1371 = vpop.f32.mrf.mxu0
        %v1372 = vadd.f32 %v1288, %v1371
        %v1373 = vpop.f32.mrf.mxu0
        %v1374 = vpop.f32.mrf.mxu0
        %v1375 = vadd.f32 %v1288, %v1374
        %v1376 = vpop.f32.mrf.mxu0
        %1377 = vmatprep.mubr.bf16.mxu0 0
        %1378 = vmatmul.mubr.bf16.gmra.mxu0 %v1236
        %v1379 = vpop.f32.mrf.mxu0
        %v1380 = vadd.f32 %v1288, %v1379
        %v1381 = vpop.f32.mrf.mxu0
        %v1382 = vpop.f32.mrf.mxu0
        %v1383 = vadd.f32 %v1288, %v1382
        %v1384 = vpop.f32.mrf.mxu0
        %1385 = vmatprep.mubr.bf16.mxu0 0
        %1386 = vmatmul.mubr.bf16.gmra.mxu0 %v1237
        %v1387 = vpop.f32.mrf.mxu0
        %v1388 = vadd.f32 %v1288, %v1387
        %v1389 = vpop.f32.mrf.mxu0
        %v1390 = vpop.f32.mrf.mxu0
        %v1391 = vadd.f32 %v1288, %v1390
        %v1392 = vpop.f32.mrf.mxu0
        %1393 = vmatprep.mubr.bf16.mxu0 0
        %1394 = vmatmul.mubr.bf16.gmra.mxu0 %v1238
        %v1395 = vpop.f32.mrf.mxu0
        %v1396 = vadd.f32 %v1288, %v1395
        %v1397 = vpop.f32.mrf.mxu0
        %v1398 = vpop.f32.mrf.mxu0
        %v1399 = vadd.f32 %v1288, %v1398
        %v1400 = vpop.f32.mrf.mxu0
        %1401 = vmatprep.mubr.bf16.mxu0 0
        %1402 = vmatmul.mubr.bf16.gmra.mxu0 %v1239
        %v1403 = vpop.f32.mrf.mxu0
        %v1404 = vadd.f32 %v1288, %v1403
        %v1405 = vpop.f32.mrf.mxu0
        %v1406 = vpop.f32.mrf.mxu0
        %v1407 = vadd.f32 %v1288, %v1406
        %v1408 = vpop.f32.mrf.mxu0
        %1409 = vmatprep.mubr.bf16.mxu0 0
        %1410 = vmatmul.mubr.bf16.gmra.mxu0 %v1240
        %v1411 = vpop.f32.mrf.mxu0
        %v1412 = vadd.f32 %v1288, %v1411
        %v1413 = vpop.f32.mrf.mxu0
        %v1414 = vpop.f32.mrf.mxu0
        %v1415 = vadd.f32 %v1288, %v1414
        %v1416 = vpop.f32.mrf.mxu0
        %1417 = vmatprep.mubr.bf16.mxu0 0
        %1418 = vmatmul.mubr.bf16.gmra.mxu0 %v1241
        %v1419 = vpop.f32.mrf.mxu0
        %v1420 = vadd.f32 %v1288, %v1419
        %v1421 = vpop.f32.mrf.mxu0
        %v1422 = vpop.f32.mrf.mxu0
        %v1423 = vadd.f32 %v1288, %v1422
        %v1424 = vpop.f32.mrf.mxu0
        %1425 = vmatprep.mubr.bf16.mxu0 0
        %1426 = vmatmul.mubr.bf16.gmra.mxu0 %v1242
        %v1427 = vpop.f32.mrf.mxu0
        %v1428 = vadd.f32 %v1288, %v1427
        %v1429 = vpop.f32.mrf.mxu0
        %v1430 = vpop.f32.mrf.mxu0
        %v1431 = vadd.f32 %v1288, %v1430
        %v1432 = vpop.f32.mrf.mxu0
        %1433 = vmatprep.mubr.bf16.mxu0 0
        %1434 = vmatmul.mubr.bf16.gmra.mxu0 %v1243
        %v1435 = vpop.f32.mrf.mxu0
        %v1436 = vadd.f32 %v1288, %v1435
        %v1437 = vpop.f32.mrf.mxu0
        %v1438 = vpop.f32.mrf.mxu0
        %v1439 = vadd.f32 %v1288, %v1438
        %v1440 = vpop.f32.mrf.mxu0
        %1441 = vmatprep.mubr.bf16.mxu0 0
        %1442 = vmatmul.mubr.bf16.gmra.mxu0 %v1244
        %v1443 = vpop.f32.mrf.mxu0
        %v1444 = vadd.f32 %v1288, %v1443
        %v1445 = vpop.f32.mrf.mxu0
        %v1446 = vpop.f32.mrf.mxu0
        %v1447 = vadd.f32 %v1288, %v1446
        %v1448 = vpop.f32.mrf.mxu0
        %1449 = vmatprep.mubr.bf16.mxu0 0
        %1450 = vmatmul.mubr.bf16.gmra.mxu0 %v1245
        %v1451 = vpop.f32.mrf.mxu0
        %v1452 = vadd.f32 %v1288, %v1451
        %v1453 = vpop.f32.mrf.mxu0
        %v1454 = vpop.f32.mrf.mxu0
        %v1455 = vadd.f32 %v1288, %v1454
        %v1456 = vpop.f32.mrf.mxu0
        %1457 = vmatprep.mubr.bf16.mxu0 0
        %1458 = vmatmul.mubr.bf16.gmra.mxu0 %v1246
        %v1459 = vpop.f32.mrf.mxu0
        %v1460 = vadd.f32 %v1288, %v1459
        %v1461 = vpop.f32.mrf.mxu0
        %v1462 = vpop.f32.mrf.mxu0
        %v1463 = vadd.f32 %v1288, %v1462
        %v1464 = vpop.f32.mrf.mxu0
        %1465 = vmatprep.mubr.bf16.mxu0 0
        %1466 = vmatmul.mubr.bf16.gmra.mxu0 %v1247
        %v1467 = vpop.f32.mrf.mxu0
        %v1468 = vadd.f32 %v1288, %v1467
        %v1469 = vpop.f32.mrf.mxu0
        %v1470 = vpop.f32.mrf.mxu0
        %v1471 = vadd.f32 %v1288, %v1470
        %v1472 = vpop.f32.mrf.mxu0
        %1473 = vmatprep.mubr.bf16.mxu0 0
        %1474 = vmatmul.mubr.bf16.gmra.mxu0 %v1248
        %v1475 = vpop.f32.mrf.mxu0
        %v1476 = vadd.f32 %v1288, %v1475
        %v1477 = vpop.f32.mrf.mxu0
        %v1478 = vpop.f32.mrf.mxu0
        %v1479 = vadd.f32 %v1288, %v1478
        %v1480 = vpop.f32.mrf.mxu0
        %1481 = vmatprep.mubr.bf16.mxu0 0
        %1482 = vmatmul.mubr.bf16.gmra.mxu0 %v1249
        %v1483 = vpop.f32.mrf.mxu0
        %v1484 = vadd.f32 %v1288, %v1483
        %v1485 = vpop.f32.mrf.mxu0
        %v1486 = vpop.f32.mrf.mxu0
        %v1487 = vadd.f32 %v1288, %v1486
        %v1488 = vpop.f32.mrf.mxu0
        %1489 = vmatprep.mubr.bf16.mxu0 0
        %1490 = vmatmul.mubr.bf16.gmra.mxu0 %v1250
        %v1491 = vpop.f32.mrf.mxu0
        %v1492 = vadd.f32 %v1288, %v1491
        %v1493 = vpop.f32.mrf.mxu0
        %v1494 = vpop.f32.mrf.mxu0
        %v1495 = vadd.f32 %v1288, %v1494
        %v1496 = vpop.f32.mrf.mxu0
        %1497 = vmatprep.mubr.bf16.mxu0 0
        %1498 = vmatmul.mubr.bf16.gmra.mxu0 %v1251
        %v1499 = vpop.f32.mrf.mxu0
        %v1500 = vadd.f32 %v1288, %v1499
        %v1501 = vpop.f32.mrf.mxu0
        %v1502 = vpop.f32.mrf.mxu0
        %v1503 = vadd.f32 %v1288, %v1502
        %v1504 = vpop.f32.mrf.mxu0
        %1505 = vmatprep.mubr.bf16.mxu0 0
        %1506 = vmatmul.mubr.bf16.gmra.mxu0 %v1252
        %v1507 = vpop.f32.mrf.mxu0
        %v1508 = vadd.f32 %v1288, %v1507
        %v1509 = vpop.f32.mrf.mxu0
        %v1510 = vpop.f32.mrf.mxu0
        %v1511 = vadd.f32 %v1288, %v1510
        %v1512 = vpop.f32.mrf.mxu0
        %1513 = vmatprep.mubr.bf16.mxu0 0
        %1514 = vmatmul.mubr.bf16.gmra.mxu0 %v1253
        %v1515 = vpop.f32.mrf.mxu0
        %v1516 = vadd.f32 %v1288, %v1515
        %v1517 = vpop.f32.mrf.mxu0
        %v1518 = vpop.f32.mrf.mxu0
        %v1519 = vadd.f32 %v1288, %v1518
        %v1520 = vpop.f32.mrf.mxu0
        %1521 = vmatprep.mubr.bf16.mxu0 0
        %1522 = vmatmul.mubr.bf16.gmra.mxu0 %v1254
        %v1523 = vpop.f32.mrf.mxu0
        %v1524 = vadd.f32 %v1288, %v1523
        %v1525 = vpop.f32.mrf.mxu0
        %v1526 = vpop.f32.mrf.mxu0
        %v1527 = vadd.f32 %v1288, %v1526
        %v1528 = vpop.f32.mrf.mxu0
        %1529 = vmatprep.mubr.bf16.mxu0 0
        %1530 = vmatmul.mubr.bf16.gmra.mxu0 %v1255
        %v1531 = vpop.f32.mrf.mxu0
        %v1532 = vadd.f32 %v1288, %v1531
        %v1533 = vpop.f32.mrf.mxu0
        %v1534 = vpop.f32.mrf.mxu0
        %v1535 = vadd.f32 %v1288, %v1534
        %v1536 = vpop.f32.mrf.mxu0
        %1537 = vmatprep.mubr.bf16.mxu0 0
        %1538 = vmatmul.mubr.bf16.gmra.mxu0 %v1256
        %v1539 = vpop.f32.mrf.mxu0
        %v1540 = vadd.f32 %v1288, %v1539
        %v1541 = vpop.f32.mrf.mxu0
        %v1542 = vpop.f32.mrf.mxu0
        %v1543 = vadd.f32 %v1288, %v1542
        %v1544 = vpop.f32.mrf.mxu0
        %1545 = vmatprep.mubr.bf16.mxu0 0
        %1546 = vmatmul.mubr.bf16.gmra.mxu0 %v1257
        %v1547 = vpop.f32.mrf.mxu0
        %v1548 = vadd.f32 %v1288, %v1547
        %v1549 = vpop.f32.mrf.mxu0
        %v1550 = vpop.f32.mrf.mxu0
        %v1551 = vadd.f32 %v1288, %v1550
        %v1552 = vpop.f32.mrf.mxu0
        %1553 = vmatprep.mubr.bf16.mxu0 0
        %1554 = vmatmul.mubr.bf16.gmra.mxu0 %v1258
        %v1555 = vpop.f32.mrf.mxu0
        %v1556 = vadd.f32 %v1288, %v1555
        %v1557 = vpop.f32.mrf.mxu0
        %v1558 = vpop.f32.mrf.mxu0
        %v1559 = vadd.f32 %v1288, %v1558
        %v1560 = vpop.f32.mrf.mxu0
        %1561 = vmatprep.mubr.bf16.mxu0 0
        %1562 = vmatmul.mubr.bf16.gmra.mxu0 %v1259
        %v1563 = vpop.f32.mrf.mxu0
        %v1564 = vadd.f32 %v1288, %v1563
        %v1565 = vpop.f32.mrf.mxu0
        %v1566 = vpop.f32.mrf.mxu0
        %v1567 = vadd.f32 %v1288, %v1566
        %v1568 = vpop.f32.mrf.mxu0
        %1569 = vmatprep.mubr.bf16.mxu0 0
        %1570 = vmatmul.mubr.bf16.gmra.mxu0 %v1260
        %v1571 = vpop.f32.mrf.mxu0
        %v1572 = vadd.f32 %v1288, %v1571
        %v1573 = vpop.f32.mrf.mxu0
        %v1574 = vpop.f32.mrf.mxu0
        %v1575 = vadd.f32 %v1288, %v1574
        %v1576 = vpop.f32.mrf.mxu0
        %1577 = vmatprep.mubr.bf16.mxu0 0
        %1578 = vmatmul.mubr.bf16.gmra.mxu0 %v1261
        %v1579 = vpop.f32.mrf.mxu0
        %v1580 = vadd.f32 %v1288, %v1579
        %v1581 = vpop.f32.mrf.mxu0
        %v1582 = vpop.f32.mrf.mxu0
        %v1583 = vadd.f32 %v1288, %v1582
        %v1584 = vpop.f32.mrf.mxu0
        %1585 = vmatprep.mubr.bf16.mxu0 0
        %1586 = vmatmul.mubr.bf16.gmra.mxu0 %v1262
        %v1587 = vpop.f32.mrf.mxu0
        %v1588 = vadd.f32 %v1288, %v1587
        %v1589 = vpop.f32.mrf.mxu0
        %v1590 = vpop.f32.mrf.mxu0
        %v1591 = vadd.f32 %v1288, %v1590
        %v1592 = vpop.f32.mrf.mxu0
        %1593 = vmatprep.mubr.bf16.mxu0 0
        %1594 = vmatmul.mubr.bf16.gmra.mxu0 %v1263
        %v1595 = vpop.f32.mrf.mxu0
        %v1596 = vadd.f32 %v1288, %v1595
        %v1597 = vpop.f32.mrf.mxu0
        %v1598 = vpop.f32.mrf.mxu0
        %v1599 = vadd.f32 %v1288, %v1598
        %v1600 = vpop.f32.mrf.mxu0
        %1601 = vmatprep.mubr.bf16.mxu0 0
        %1602 = vmatmul.mubr.bf16.gmra.mxu0 %v1264
        %v1603 = vpop.f32.mrf.mxu0
        %v1604 = vadd.f32 %v1288, %v1603
        %v1605 = vpop.f32.mrf.mxu0
        %v1606 = vpop.f32.mrf.mxu0
        %v1607 = vadd.f32 %v1288, %v1606
        %v1608 = vpop.f32.mrf.mxu0
        %1609 = vmatprep.mubr.bf16.mxu0 0
        %1610 = vmatmul.mubr.bf16.gmra.mxu0 %v1265
        %v1611 = vpop.f32.mrf.mxu0
        %v1612 = vadd.f32 %v1288, %v1611
        %v1613 = vpop.f32.mrf.mxu0
        %v1614 = vpop.f32.mrf.mxu0
        %v1615 = vadd.f32 %v1288, %v1614
        %v1616 = vpop.f32.mrf.mxu0
        %1617 = vmatprep.mubr.bf16.mxu0 0
        %1618 = vmatmul.mubr.bf16.gmra.mxu0 %v1266
        %v1619 = vpop.f32.mrf.mxu0
        %v1620 = vadd.f32 %v1288, %v1619
        %v1621 = vpop.f32.mrf.mxu0
        %v1622 = vpop.f32.mrf.mxu0
        %v1623 = vadd.f32 %v1288, %v1622
        %v1624 = vpop.f32.mrf.mxu0
        %1625 = vdwg.mxu0
        %v1626 = vtanh.pop %v1372
        %v1627 = vtanh.pop %v1375
        %v1628 = vtanh.pop %v1380
        %v1629 = vtanh.pop %v1383
        %v1630 = vtanh.pop %v1388
        %v1631 = vtanh.pop %v1391
        %v1632 = vtanh.pop %v1396
        %v1633 = vtanh.pop %v1399
        %v1634 = vtanh.pop %v1404
        %v1635 = vtanh.pop %v1407
        %v1636 = vtanh.pop %v1412
        %v1637 = vtanh.pop %v1415
        %v1638 = vtanh.pop %v1420
        %v1639 = vtanh.pop %v1423
        %v1640 = vtanh.pop %v1428
        %v1641 = vtanh.pop %v1431
        %v1642 = vtanh.pop %v1436
        %v1643 = vtanh.pop %v1439
        %v1644 = vtanh.pop %v1444
        %v1645 = vtanh.pop %v1447
        %v1646 = vtanh.pop %v1452
        %v1647 = vtanh.pop %v1455
        %v1648 = vtanh.pop %v1460
        %v1649 = vtanh.pop %v1463
        %v1650 = vtanh.pop %v1468
        %v1651 = vtanh.pop %v1471
        %v1652 = vtanh.pop %v1476
        %v1653 = vtanh.pop %v1479
        %v1654 = vtanh.pop %v1484
        %v1655 = vtanh.pop %v1487
        %v1656 = vtanh.pop %v1492
        %v1657 = vtanh.pop %v1495
        %v1658 = vtanh.pop %v1500
        %v1659 = vtanh.pop %v1503
        %v1660 = vtanh.pop %v1508
        %v1661 = vtanh.pop %v1511
        %v1662 = vtanh.pop %v1516
        %v1663 = vtanh.pop %v1519
        %v1664 = vtanh.pop %v1524
        %v1665 = vtanh.pop %v1527
        %v1666 = vtanh.pop %v1532
        %v1667 = vtanh.pop %v1535
        %v1668 = vtanh.pop %v1540
        %v1669 = vtanh.pop %v1543
        %v1670 = vtanh.pop %v1548
        %v1671 = vtanh.pop %v1551
        %v1672 = vtanh.pop %v1556
        %v1673 = vtanh.pop %v1559
        %v1674 = vtanh.pop %v1564
        %v1675 = vtanh.pop %v1567
        %v1676 = vtanh.pop %v1572
        %v1677 = vtanh.pop %v1575
        %v1678 = vtanh.pop %v1580
        %v1679 = vtanh.pop %v1583
        %v1680 = vtanh.pop %v1588
        %v1681 = vtanh.pop %v1591
        %v1682 = vtanh.pop %v1596
        %v1683 = vtanh.pop %v1599
        %v1684 = vtanh.pop %v1604
        %v1685 = vtanh.pop %v1607
        %v1686 = vtanh.pop %v1612
        %v1687 = vtanh.pop %v1615
        %v1688 = vtanh.pop %v1620
        %v1689 = vtanh.pop %v1623
        %v1690 = vld [vmem:[#allocation8] sm:$0xff]
        %v1691 = vld [vmem:[#allocation8 + $0x8] sm:$0xff]
        %v1692 = vld [vmem:[#allocation8 + $0x10] sm:$0xff]
        %v1693 = vld [vmem:[#allocation8 + $0x18] sm:$0xff]
        %v1694 = vld [vmem:[#allocation8 + $0x20] sm:$0xff]
        %v1695 = vld [vmem:[#allocation8 + $0x28] sm:$0xff]
        %v1696 = vld [vmem:[#allocation8 + $0x30] sm:$0xff]
        %v1697 = vld [vmem:[#allocation8 + $0x38] sm:$0xff]
        %v1698 = vld [vmem:[#allocation8 + $0x40] sm:$0xff]
        %v1699 = vld [vmem:[#allocation8 + $0x48] sm:$0xff]
        %v1700 = vld [vmem:[#allocation8 + $0x50] sm:$0xff]
        %v1701 = vld [vmem:[#allocation8 + $0x58] sm:$0xff]
        %v1702 = vld [vmem:[#allocation8 + $0x60] sm:$0xff]
        %v1703 = vld [vmem:[#allocation8 + $0x68] sm:$0xff]
        %v1704 = vld [vmem:[#allocation8 + $0x70] sm:$0xff]
        %v1705 = vld [vmem:[#allocation8 + $0x78] sm:$0xff]
        %v1706 = vmul.f32 %v1626, %v1690
        %v1707 = vmul.f32 %v1627, %v1691
        %v1708 = vmul.f32 %v1628, %v1692
        %v1709 = vmul.f32 %v1629, %v1693
        %v1710 = vmul.f32 %v1630, %v1694
        %v1711 = vmul.f32 %v1631, %v1695
        %v1712 = vmul.f32 %v1632, %v1696
        %v1713 = vmul.f32 %v1633, %v1697
        %v1714 = vmul.f32 %v1634, %v1698
        %v1715 = vmul.f32 %v1635, %v1699
        %v1716 = vmul.f32 %v1636, %v1700
        %v1717 = vmul.f32 %v1637, %v1701
        %v1718 = vmul.f32 %v1638, %v1702
        %v1719 = vmul.f32 %v1639, %v1703
        %v1720 = vmul.f32 %v1640, %v1704
        %v1721 = vmul.f32 %v1641, %v1705
        %v1722 = vmul.f32 %v1642, %v1690
        %v1723 = vmul.f32 %v1643, %v1691
        %v1724 = vmul.f32 %v1644, %v1692
        %v1725 = vmul.f32 %v1645, %v1693
        %v1726 = vmul.f32 %v1646, %v1694
        %v1727 = vmul.f32 %v1647, %v1695
        %v1728 = vmul.f32 %v1648, %v1696
        %v1729 = vmul.f32 %v1649, %v1697
        %v1730 = vmul.f32 %v1650, %v1698
        %v1731 = vmul.f32 %v1651, %v1699
        %v1732 = vmul.f32 %v1652, %v1700
        %v1733 = vmul.f32 %v1653, %v1701
        %v1734 = vmul.f32 %v1654, %v1702
        %v1735 = vmul.f32 %v1655, %v1703
        %v1736 = vmul.f32 %v1656, %v1704
        %v1737 = vmul.f32 %v1657, %v1705
        %v1738 = vmul.f32 %v1658, %v1690
        %v1739 = vmul.f32 %v1659, %v1691
        %v1740 = vmul.f32 %v1660, %v1692
        %v1741 = vmul.f32 %v1661, %v1693
        %v1742 = vmul.f32 %v1662, %v1694
        %v1743 = vmul.f32 %v1663, %v1695
        %v1744 = vmul.f32 %v1664, %v1696
        %v1745 = vmul.f32 %v1665, %v1697
        %v1746 = vmul.f32 %v1666, %v1698
        %v1747 = vmul.f32 %v1667, %v1699
        %v1748 = vmul.f32 %v1668, %v1700
        %v1749 = vmul.f32 %v1669, %v1701
        %v1750 = vmul.f32 %v1670, %v1702
        %v1751 = vmul.f32 %v1671, %v1703
        %v1752 = vmul.f32 %v1672, %v1704
        %v1753 = vmul.f32 %v1673, %v1705
        %v1754 = vmul.f32 %v1674, %v1690
        %v1755 = vmul.f32 %v1675, %v1691
        %v1756 = vmul.f32 %v1676, %v1692
        %v1757 = vmul.f32 %v1677, %v1693
        %v1758 = vmul.f32 %v1678, %v1694
        %v1759 = vmul.f32 %v1679, %v1695
        %v1760 = vmul.f32 %v1680, %v1696
        %v1761 = vmul.f32 %v1681, %v1697
        %v1762 = vmul.f32 %v1682, %v1698
        %v1763 = vmul.f32 %v1683, %v1699
        %v1764 = vmul.f32 %v1684, %v1700
        %v1765 = vmul.f32 %v1685, %v1701
        %v1766 = vmul.f32 %v1686, %v1702
        %v1767 = vmul.f32 %v1687, %v1703
        %v1768 = vmul.f32 %v1688, %v1704
        %v1769 = vmul.f32 %v1689, %v1705
        %1770 = vst [vmem:[%s258] sm:$0xff] %v1706
        %1771 = vst [vmem:[%s258 + $0x8] sm:$0xff] %v1707
        %1772 = vst [vmem:[%s258 + $0x10] sm:$0xff] %v1708
        %1773 = vst [vmem:[%s258 + $0x18] sm:$0xff] %v1709
        %1774 = vst [vmem:[%s258 + $0x20] sm:$0xff] %v1710
        %1775 = vst [vmem:[%s258 + $0x28] sm:$0xff] %v1711
        %1776 = vst [vmem:[%s258 + $0x30] sm:$0xff] %v1712
        %1777 = vst [vmem:[%s258 + $0x38] sm:$0xff] %v1713
        %1778 = vst [vmem:[%s258 + $0x40] sm:$0xff] %v1714
        %1779 = vst [vmem:[%s258 + $0x48] sm:$0xff] %v1715
        %1780 = vst [vmem:[%s258 + $0x50] sm:$0xff] %v1716
        %1781 = vst [vmem:[%s258 + $0x58] sm:$0xff] %v1717
        %1782 = vst [vmem:[%s258 + $0x60] sm:$0xff] %v1718
        %1783 = vst [vmem:[%s258 + $0x68] sm:$0xff] %v1719
        %1784 = vst [vmem:[%s258 + $0x70] sm:$0xff] %v1720
        %1785 = vst [vmem:[%s258 + $0x78] sm:$0xff] %v1721
        %1786 = vst [vmem:[%s258 + $0x80] sm:$0xff] %v1722
        %1787 = vst [vmem:[%s258 + $0x88] sm:$0xff] %v1723
        %1788 = vst [vmem:[%s258 + $0x90] sm:$0xff] %v1724
        %1789 = vst [vmem:[%s258 + $0x98] sm:$0xff] %v1725
        %1790 = vst [vmem:[%s258 + $0xa0] sm:$0xff] %v1726
        %1791 = vst [vmem:[%s258 + $0xa8] sm:$0xff] %v1727
        %1792 = vst [vmem:[%s258 + $0xb0] sm:$0xff] %v1728
        %1793 = vst [vmem:[%s258 + $0xb8] sm:$0xff] %v1729
        %1794 = vst [vmem:[%s258 + $0xc0] sm:$0xff] %v1730
        %1795 = vst [vmem:[%s258 + $0xc8] sm:$0xff] %v1731
        %1796 = vst [vmem:[%s258 + $0xd0] sm:$0xff] %v1732
        %1797 = vst [vmem:[%s258 + $0xd8] sm:$0xff] %v1733
        %1798 = vst [vmem:[%s258 + $0xe0] sm:$0xff] %v1734
        %1799 = vst [vmem:[%s258 + $0xe8] sm:$0xff] %v1735
        %1800 = vst [vmem:[%s258 + $0xf0] sm:$0xff] %v1736
        %1801 = vst [vmem:[%s258 + $0xf8] sm:$0xff] %v1737
        %1802 = vst [vmem:[%s258 + $0x100] sm:$0xff] %v1738
        %1803 = vst [vmem:[%s258 + $0x108] sm:$0xff] %v1739
        %1804 = vst [vmem:[%s258 + $0x110] sm:$0xff] %v1740
        %1805 = vst [vmem:[%s258 + $0x118] sm:$0xff] %v1741
        %1806 = vst [vmem:[%s258 + $0x120] sm:$0xff] %v1742
        %1807 = vst [vmem:[%s258 + $0x128] sm:$0xff] %v1743
        %1808 = vst [vmem:[%s258 + $0x130] sm:$0xff] %v1744
        %1809 = vst [vmem:[%s258 + $0x138] sm:$0xff] %v1745
        %1810 = vst [vmem:[%s258 + $0x140] sm:$0xff] %v1746
        %1811 = vst [vmem:[%s258 + $0x148] sm:$0xff] %v1747
        %1812 = vst [vmem:[%s258 + $0x150] sm:$0xff] %v1748
        %1813 = vst [vmem:[%s258 + $0x158] sm:$0xff] %v1749
        %1814 = vst [vmem:[%s258 + $0x160] sm:$0xff] %v1750
        %1815 = vst [vmem:[%s258 + $0x168] sm:$0xff] %v1751
        %1816 = vst [vmem:[%s258 + $0x170] sm:$0xff] %v1752
        %1817 = vst [vmem:[%s258 + $0x178] sm:$0xff] %v1753
        %1818 = vst [vmem:[%s258 + $0x180] sm:$0xff] %v1754
        %1819 = vst [vmem:[%s258 + $0x188] sm:$0xff] %v1755
        %1820 = vst [vmem:[%s258 + $0x190] sm:$0xff] %v1756
        %1821 = vst [vmem:[%s258 + $0x198] sm:$0xff] %v1757
        %1822 = vst [vmem:[%s258 + $0x1a0] sm:$0xff] %v1758
        %1823 = vst [vmem:[%s258 + $0x1a8] sm:$0xff] %v1759
        %1824 = vst [vmem:[%s258 + $0x1b0] sm:$0xff] %v1760
        %1825 = vst [vmem:[%s258 + $0x1b8] sm:$0xff] %v1761
        %1826 = vst [vmem:[%s258 + $0x1c0] sm:$0xff] %v1762
        %1827 = vst [vmem:[%s258 + $0x1c8] sm:$0xff] %v1763
        %1828 = vst [vmem:[%s258 + $0x1d0] sm:$0xff] %v1764
        %1829 = vst [vmem:[%s258 + $0x1d8] sm:$0xff] %v1765
        %1830 = vst [vmem:[%s258 + $0x1e0] sm:$0xff] %v1766
        %1831 = vst [vmem:[%s258 + $0x1e8] sm:$0xff] %v1767
        %1832 = vst [vmem:[%s258 + $0x1f0] sm:$0xff] %v1768
        %1833 = vst [vmem:[%s258 + $0x1f8] sm:$0xff] %v1769
        %s1834 = sand.u32 %s120, 1
        %s1835 = scalar_lea.sflag [#allocation4], %s1834
        %s1836 = sand.u32 %s120, 1
        %s1837 = smul.addr %s1836, 512
        %s1838 = scalar_lea.vmem [#allocation10], %s1837
        // Predicated region
        $region53: #{tpu_custom_call.1} parent=35 // pred_check
          %p1839 = pneg %p130
        $region54: #{tpu_custom_call.1} parent=35 // pred_check_branch
          %1841 = sbr.rel (%p1839) target = $region56
        $region55: #{tpu_custom_call.1} parent=35 // pred_region
          %s1842 = smul.u32 4, %s23
          %s1844 = ssub.s32 8192, 8192
          %1845 = vsyncadd %s1835, %s1844
          %s1846 = smul.addr %s1842, 16
          %s1847 = smul.addr %s1846, 128
          %s1848 = scalar_lea.hbm %s4, %s1847
          %s1849 = sshll.u32 %s1838, 4
          %s1850 = int_to_ptr.vmem [resolvable:$true] %s1849
          %1855 = dma.vmem_to_hbm [thread:$0]  %s1850, 8192, %s1848, %s1835, 128, 128, 8
        $region56: #{tpu_custom_call.1} parent=35 // pred_fallthru
          _
      $region36: #{tpu_custom_call.1} parent=5 // pred_fallthru
        _
      %p1856 = scmp.le.s32.totalorder 2, %s18
      // Predicated region
      $region57: #{tpu_custom_call.1} parent=5 // pred_check
        %p1857 = pneg %p1856
      $region58: #{tpu_custom_call.1} parent=5 // pred_check_branch
        %1859 = sbr.rel (%p1857) target = $region60
      $region59: #{tpu_custom_call.1} parent=5 // pred_region
        %s1860 = ssub.s32 %s18, 2
        // Predicated region
        $region61: #{tpu_custom_call.1} parent=59 // pred_check
          %p1861 = pneg %p136
        $region62: #{tpu_custom_call.1} parent=59 // pred_check_branch
          %1863 = sbr.rel (%p1861) target = $region64
        $region63: #{tpu_custom_call.1} parent=59 // pred_region
          %s1864 = sand.u32 %s121, 1
          %s1865 = scalar_lea.sflag [#allocation4], %s1864
          %s1866 = sand.u32 %s121, 1
          %s1867 = smul.addr %s1866, 512
          %s1868 = scalar_lea.vmem [#allocation10], %s1867
          %1869 = dma.done %s1865, 8192
        $region64: #{tpu_custom_call.1} parent=59 // pred_fallthru
          _
      $region60: #{tpu_custom_call.1} parent=5 // pred_fallthru
        _
    $region6: #{tpu_custom_call.1} parent=1 // loop_footer
      %s22 = sadd.s32 1, %s18
    $region7: #{tpu_custom_call.1} parent=1 // loop_footer_branch
      %17 = sbr.rel target = $region3
    $region8: #{tpu_custom_call.1} parent=1 // loop_exit
      _
    %1870 = vsyncpa [#allocation3], 1
    %s1871 = scalar_lea.sflag [#allocation3], 1
    %1872 = vsyncpa %s1871, 1
    %1873 = vsyncpa [#allocation6], 1
    %1874 = vsyncpa [#allocation9], 1
    %1875 = vsyncpa [#allocation4], 1
    %s1876 = scalar_lea.sflag [#allocation4], 1
    %1877 = vsyncpa %s1876, 1

</llo_original>
